<compile_context>
chip_gen: v7x
topology: tpu7x:2x2x1
jax: 0.10.0
libtpu: 0.0.40
codegen_flags: <defaults>
</compile_context>

<pallas_src>
import functools

import jax
import jax.numpy as jnp
import numpy as np
from jax.experimental import pallas as pl
from jax.experimental.pallas import tpu as pltpu


def _leaky(x, slope=0.1):
    return jnp.where(x >= 0, x, slope * x)


def gnn_encoder_kernel(B, C, E, NI,
                       x_ref, eidx_ref, etype_ref,
                       w1_ref, b1_ref, w2_ref, b2_ref,
                       wf_ref, wt_ref, wet_ref, bed_ref,
                       wsec_ref, bsec_ref, out_ref):
    f32 = jnp.float32
    NC = B * C          # total nodes   (batch folded onto sublanes)
    BE = B * E          # total edges

    # ---- BoxEncoder1 (exact spec module); w1 rows >=7 are zero so x @ w1 == box @ W1 ----
    x = x_ref[...]                                                           # (NC, Fin)
    h = jnp.dot(x, w1_ref[...], preferred_element_type=f32) + b1_ref[...]    # Linear(7,H)
    h = _leaky(_leaky(h))                  # Sequential's LeakyReLU + outer F.leaky_relu
    h = _leaky(jnp.dot(h, w2_ref[...], preferred_element_type=f32) + b2_ref[...])

    # ---- second_object running accumulation (no feat scratch, no concat) ----
    out_acc = jnp.dot(h, wsec_ref[0], preferred_element_type=f32)            # (NC, F)

    # ---- block-diagonal one-hot gather / scatter built in-kernel from raw indices ----
    eidx = eidx_ref[...]                                                     # (BE, 2) int32
    row = jax.lax.broadcasted_iota(jnp.int32, (BE, 2), 0)
    boff = jnp.zeros((BE, 2), jnp.int32)
    for b in range(1, B):                      # batch offset without integer division
        boff = boff + (row >= b * E).astype(jnp.int32)
    gidx = eidx + boff * C                                                   # global node ids
    gft = jnp.concatenate([gidx[:, 0:1], gidx[:, 1:2]], axis=0)              # (2BE, 1) [from; to]
    node_lane = jax.lax.broadcasted_iota(jnp.int32, (2 * BE, NC), 1)
    oh_ft = (node_lane == gft).astype(f32)                                   # (2BE, NC)
    scat = oh_ft[:BE, :].T                                                   # (NC, BE), hoisted

    etype = etype_ref[...]                                                   # (BE, T)

    cur = h
    for i in range(NI):   # NI is tiny here; switch to lax.fori_loop if it grows
        # one matmul gathers both endpoints; halves are sublane slices only
        g = jnp.dot(oh_ft, cur, preferred_element_type=f32)                  # (2BE, H)
        zf = jnp.dot(g[:BE, :], wf_ref[i], preferred_element_type=f32)
        zt = jnp.dot(g[BE:, :], wt_ref[i], preferred_element_type=f32)
        et = jnp.dot(etype, wet_ref[i], preferred_element_type=f32)
        z = jnp.maximum(zf + zt + et + bed_ref[i], 0.0)                      # relu, (BE, H)
        cur = jnp.dot(scat, z, preferred_element_type=f32)                   # scatter_add, (NC, H)
        out_acc = out_acc + jnp.dot(cur, wsec_ref[i + 1],
                                    preferred_element_type=f32)

    out_ref[...] = _leaky(out_acc + bsec_ref[...])                           # (NC, F)


@jax.jit
def gnn_encoder_forward(child_feats, edge_indices, edge_type_onehot, lengths, packed):
    """GNNEncoder forward. `lengths` is unused (matches the PyTorch forward)."""
    del lengths
    B, C, Fin = child_feats.shape
    E = edge_indices.shape[1]
    T = edge_type_onehot.shape[2]
    NI, _, H = packed["wf"].shape
    F_out = packed["wsec"].shape[2]
    NC, BE = B * C, B * E
    f32 = jnp.float32

    # zero-copy reshapes only — no pads / concats / ones lanes in the wrapper
    x = child_feats.astype(f32).reshape(NC, Fin)
    eidx = edge_indices.astype(jnp.int32).reshape(BE, 2)
    etype = edge_type_onehot.astype(f32).reshape(BE, T)

    kernel = functools.partial(gnn_encoder_kernel, B, C, E, NI)
    out_flat = pl.pallas_call(
        kernel,
        out_shape=jax.ShapeDtypeStruct((NC, F_out), f32),
        grid=(1,),                      # whole problem in one step; all data resident in VMEM
        in_specs=[
            pl.BlockSpec((NC, Fin), lambda i: (0, 0)),                 # child feats (flat)
            pl.BlockSpec((BE, 2), lambda i: (0, 0)),                   # raw edge indices (flat)
            pl.BlockSpec((BE, T), lambda i: (0, 0)),                   # edge type one-hot (flat)
            pl.BlockSpec((Fin, H), lambda i: (0, 0)),                  # w1 (zero-padded rows)
            pl.BlockSpec((1, H), lambda i: (0, 0)),                    # b1
            pl.BlockSpec((H, H), lambda i: (0, 0)),                    # w2
            pl.BlockSpec((1, H), lambda i: (0, 0)),                    # b2
            pl.BlockSpec((NI, H, H), lambda i: (0, 0, 0)),             # wf (from half)
            pl.BlockSpec((NI, H, H), lambda i: (0, 0, 0)),             # wt (to half)
            pl.BlockSpec((NI, T, H), lambda i: (0, 0, 0)),             # wet (edge-type part)
            pl.BlockSpec((NI, 1, H), lambda i: (0, 0, 0)),             # per-iteration bias
            pl.BlockSpec((NI + 1, H, F_out), lambda i: (0, 0, 0)),     # second_object W slabs
            pl.BlockSpec((1, F_out), lambda i: (0, 0)),                # second_object bias
        ],
        out_specs=pl.BlockSpec((NC, F_out), lambda i: (0, 0)),
        compiler_params=pltpu.CompilerParams(
            dimension_semantics=("arbitrary",)),
    )(x, eidx, etype,
      packed["w1"], packed["b1"], packed["w2"], packed["b2"],
      packed["wf"], packed["wt"], packed["wet"], packed["bed"],
      packed["wsec"], packed["bsec"])
    return out_flat.reshape(B, C, F_out)


def init_params(key, node_feat_size, hidden_size, num_iterations, edge_type_num):
    """Deterministic synthetic init matching the module's weight shapes."""
    H, F, T, NI = hidden_size, node_feat_size, edge_type_num, num_iterations
    ks = jax.random.split(key, 4)

    def lin(k, fan_in, fan_out):
        kw, kb = jax.random.split(k)
        bound = 1.0 / np.sqrt(fan_in)
        w = jax.random.uniform(kw, (fan_in, fan_out), jnp.float32, -bound, bound)
        b = jax.random.uniform(kb, (1, fan_out), jnp.float32, -bound, bound)
        return w, b

    w1, b1 = lin(ks[0], 7, H)                 # BoxEncoder1.mlp1: Linear(7, H)
    w2, b2 = lin(ks[1], H, H)                 # BoxEncoder1.mlp2: Linear(H, H)

    w_edge, b_edge = [], []
    for i in range(NI):                       # node_edge_op[i]: Linear(2H+T, H)
        w, b = lin(jax.random.fold_in(ks[2], i), 2 * H + T, H)
        w_edge.append(w)
        b_edge.append(b)
    w_edge = jnp.stack(w_edge)                # (NI, 2H+T, H)
    b_edge = jnp.stack(b_edge)                # (NI, 1, H)

    wsec, bsec = lin(ks[3], H * (NI + 1), F)  # second_object: Linear(H*(NI+1), F)
    return dict(w1=w1, b1=b1, w2=w2, b2=b2,
                w_edge=w_edge, b_edge=b_edge, wsec=wsec, bsec=bsec)


def pack_params(params, node_feat_size, hidden_size, num_iterations, edge_type_num):
    """One-time repack of module weights into the kernel's layout (no per-call work)."""
    H, T, NI = hidden_size, edge_type_num, num_iterations
    f32 = jnp.float32
    # zero-pad w1 over the unused feature columns so child_feats needs no slicing
    w1 = jnp.zeros((node_feat_size, H), f32).at[:7, :].set(params["w1"].astype(f32))
    we = params["w_edge"].astype(f32)                            # (NI, 2H+T, H)
    wsec = params["wsec"].astype(f32).reshape(NI + 1, H, -1)     # (NI+1, H, F) slabs
    return dict(
        w1=w1, b1=params["b1"].astype(f32),
        w2=params["w2"].astype(f32), b2=params["b2"].astype(f32),
        wf=we[:, :H, :], wt=we[:, H:2 * H, :], wet=we[:, 2 * H:, :],
        bed=params["b_edge"].astype(f32),
        wsec=wsec, bsec=params["bsec"].astype(f32))


def gnn_encoder_reference(child_feats, edge_indices, edge_type_onehot, lengths,
                          params, num_iterations):
    """Plain-JAX reference reproducing the PyTorch forward (edge_symmetric_type='sum')."""
    del lengths
    H = params["w1"].shape[1]
    outs = []
    for b in range(child_feats.shape[0]):
        box = child_feats[b, :, :7].astype(jnp.float32)
        efrom = edge_indices[b, :, 0].astype(jnp.int32)
        eto = edge_indices[b, :, 1].astype(jnp.int32)
        etype = edge_type_onehot[b].astype(jnp.float32)
        C = box.shape[0]

        h = _leaky(_leaky(box @ params["w1"] + params["b1"]))     # BoxEncoder1
        h = _leaky(h @ params["w2"] + params["b2"])
        feats = [h]
        cur = h
        for i in range(num_iterations):
            w = params["w_edge"][i]
            z = (cur[efrom] @ w[:H] + cur[eto] @ w[H:2 * H]
                 + etype @ w[2 * H:] + params["b_edge"][i])
            z = jnp.maximum(z, 0.0)
            cur = jnp.zeros((C, H), jnp.float32).at[efrom].add(z)
            feats.append(cur)
        acc = jnp.concatenate(feats, axis=-1) @ params["wsec"] + params["bsec"]
        outs.append(_leaky(acc))
    return jnp.stack(outs)


if __name__ == "__main__":
    # Small but representative hyper-parameters
    node_feat_size = 16
    hidden_size = 32
    num_iterations = 2
    edge_type_num = 4
    batch, max_childs, num_edges = 2, 10, 12

    key = jax.random.PRNGKey(0)
    k_feat, k_idx, k_type, k_param = jax.random.split(key, 4)

    child_feats = jax.random.normal(
        k_feat, (batch, max_childs, node_feat_size), jnp.float32)
    edge_indices = jax.random.randint(
        k_idx, (batch, num_edges, 2), 0, max_childs, jnp.int32)
    etype_ids = jax.random.randint(
        k_type, (batch, num_edges), 0, edge_type_num, jnp.int32)
    edge_type_onehot = jax.nn.one_hot(etype_ids, edge_type_num, dtype=jnp.float32)
    lengths = jnp.full((batch,), max_childs, jnp.int32)

    params = init_params(k_param, node_feat_size, hidden_size,
                         num_iterations, edge_type_num)
    packed = pack_params(params, node_feat_size, hidden_size,
                         num_iterations, edge_type_num)

    out = gnn_encoder_forward(child_feats, edge_indices, edge_type_onehot,
                              lengths, packed)
    out = jax.block_until_ready(out)

    ref = gnn_encoder_reference(child_feats, edge_indices, edge_type_onehot,
                                lengths, params, num_iterations)
    np.testing.assert_allclose(np.asarray(out), np.asarray(ref),
                               rtol=1e-4, atol=1e-4)
    print("KERNEL_OK")
</pallas_src>

<mosaic_0001>
module attributes {stable_mosaic.version = 11 : i64} {
  func.func @gnn_encoder_kernel(%arg0: i32, %arg1: memref<20x16xf32, #tpu.memory_space<vmem>>, %arg2: memref<24x2xi32, #tpu.memory_space<vmem>>, %arg3: memref<24x4xf32, #tpu.memory_space<vmem>>, %arg4: memref<16x32xf32, #tpu.memory_space<vmem>>, %arg5: memref<1x32xf32, #tpu.memory_space<vmem>>, %arg6: memref<32x32xf32, #tpu.memory_space<vmem>>, %arg7: memref<1x32xf32, #tpu.memory_space<vmem>>, %arg8: memref<2x32x32xf32, #tpu.memory_space<vmem>>, %arg9: memref<2x32x32xf32, #tpu.memory_space<vmem>>, %arg10: memref<2x4x32xf32, #tpu.memory_space<vmem>>, %arg11: memref<2x1x32xf32, #tpu.memory_space<vmem>>, %arg12: memref<3x32x16xf32, #tpu.memory_space<vmem>>, %arg13: memref<1x16xf32, #tpu.memory_space<vmem>>, %arg14: memref<20x16xf32, #tpu.memory_space<vmem>>) attributes {dimension_semantics = [#tpu.dimension_semantics<arbitrary>], iteration_bounds = array<i64: 1>, scalar_prefetch = 0 : i64, scratch_operands = 0 : i64, tpu.core_type = #tpu.core_type<tc>, window_params = [{pipeline_mode = #tpu.pipeline_mode<synchronous>, transform_indices = @transform_0, window_bounds = array<i64: 20, 16>}, {pipeline_mode = #tpu.pipeline_mode<synchronous>, transform_indices = @transform_1, window_bounds = array<i64: 24, 2>}, {pipeline_mode = #tpu.pipeline_mode<synchronous>, transform_indices = @transform_2, window_bounds = array<i64: 24, 4>}, {pipeline_mode = #tpu.pipeline_mode<synchronous>, transform_indices = @transform_3, window_bounds = array<i64: 16, 32>}, {pipeline_mode = #tpu.pipeline_mode<synchronous>, transform_indices = @transform_4, window_bounds = array<i64: 1, 32>}, {pipeline_mode = #tpu.pipeline_mode<synchronous>, transform_indices = @transform_5, window_bounds = array<i64: 32, 32>}, {pipeline_mode = #tpu.pipeline_mode<synchronous>, transform_indices = @transform_6, window_bounds = array<i64: 1, 32>}, {pipeline_mode = #tpu.pipeline_mode<synchronous>, transform_indices = @transform_7, window_bounds = array<i64: 2, 32, 32>}, {pipeline_mode = #tpu.pipeline_mode<synchronous>, transform_indices = @transform_8, window_bounds = array<i64: 2, 32, 32>}, {pipeline_mode = #tpu.pipeline_mode<synchronous>, transform_indices = @transform_9, window_bounds = array<i64: 2, 4, 32>}, {pipeline_mode = #tpu.pipeline_mode<synchronous>, transform_indices = @transform_10, window_bounds = array<i64: 2, 1, 32>}, {pipeline_mode = #tpu.pipeline_mode<synchronous>, transform_indices = @transform_11, window_bounds = array<i64: 3, 32, 16>}, {pipeline_mode = #tpu.pipeline_mode<synchronous>, transform_indices = @transform_12, window_bounds = array<i64: 1, 16>}, {pipeline_mode = #tpu.pipeline_mode<synchronous>, transform_indices = @transform_13, window_bounds = array<i64: 20, 16>}]} {
    %c0 = arith.constant 0 : index
    %c0_0 = arith.constant 0 : index
    %0 = vector.load %arg1[%c0, %c0_0] : memref<20x16xf32, #tpu.memory_space<vmem>>, vector<20x16xf32>
    %c0_1 = arith.constant 0 : index
    %c0_2 = arith.constant 0 : index
    %1 = vector.load %arg4[%c0_1, %c0_2] : memref<16x32xf32, #tpu.memory_space<vmem>>, vector<16x32xf32>
    %cst = arith.constant dense<0.000000e+00> : vector<20x32xf32>
    %2 = tpu.matmul %0, %1, %cst {dimension_numbers = #tpu.dot_dimension_numbers<[1], [0], [0], [1], [0, 0, 1, 1], [], []>} : vector<20x16xf32>, vector<16x32xf32>, vector<20x32xf32> -> vector<20x32xf32>
    %c0_3 = arith.constant 0 : index
    %c0_4 = arith.constant 0 : index
    %3 = vector.load %arg5[%c0_3, %c0_4] : memref<1x32xf32, #tpu.memory_space<vmem>>, vector<1x32xf32>
    %4 = vector.broadcast %3 : vector<1x32xf32> to vector<20x32xf32>
    %5 = arith.addf %2, %4 : vector<20x32xf32>
    %cst_5 = arith.constant 0.000000e+00 : f32
    %6 = vector.broadcast %cst_5 : f32 to vector<20x32xf32>
    %7 = arith.cmpf oge, %5, %6 : vector<20x32xf32>
    %cst_6 = arith.constant 1.000000e-01 : f32
    %8 = vector.broadcast %cst_6 : f32 to vector<20x32xf32>
    %9 = arith.mulf %8, %5 : vector<20x32xf32>
    %10 = arith.select %7, %5, %9 : vector<20x32xi1>, vector<20x32xf32>
    %cst_7 = arith.constant 0.000000e+00 : f32
    %11 = vector.broadcast %cst_7 : f32 to vector<20x32xf32>
    %12 = arith.cmpf oge, %10, %11 : vector<20x32xf32>
    %cst_8 = arith.constant 1.000000e-01 : f32
    %13 = vector.broadcast %cst_8 : f32 to vector<20x32xf32>
    %14 = arith.mulf %13, %10 : vector<20x32xf32>
    %15 = arith.select %12, %10, %14 : vector<20x32xi1>, vector<20x32xf32>
    %c0_9 = arith.constant 0 : index
    %c0_10 = arith.constant 0 : index
    %16 = vector.load %arg6[%c0_9, %c0_10] : memref<32x32xf32, #tpu.memory_space<vmem>>, vector<32x32xf32>
    %cst_11 = arith.constant dense<0.000000e+00> : vector<20x32xf32>
    %17 = tpu.matmul %15, %16, %cst_11 {dimension_numbers = #tpu.dot_dimension_numbers<[1], [0], [0], [1], [0, 0, 1, 1], [], []>} : vector<20x32xf32>, vector<32x32xf32>, vector<20x32xf32> -> vector<20x32xf32>
    %c0_12 = arith.constant 0 : index
    %c0_13 = arith.constant 0 : index
    %18 = vector.load %arg7[%c0_12, %c0_13] : memref<1x32xf32, #tpu.memory_space<vmem>>, vector<1x32xf32>
    %19 = vector.broadcast %18 : vector<1x32xf32> to vector<20x32xf32>
    %20 = arith.addf %17, %19 : vector<20x32xf32>
    %cst_14 = arith.constant 0.000000e+00 : f32
    %21 = vector.broadcast %cst_14 : f32 to vector<20x32xf32>
    %22 = arith.cmpf oge, %20, %21 : vector<20x32xf32>
    %cst_15 = arith.constant 1.000000e-01 : f32
    %23 = vector.broadcast %cst_15 : f32 to vector<20x32xf32>
    %24 = arith.mulf %23, %20 : vector<20x32xf32>
    %25 = arith.select %22, %20, %24 : vector<20x32xi1>, vector<20x32xf32>
    %c0_16 = arith.constant 0 : index
    %c0_17 = arith.constant 0 : index
    %c0_18 = arith.constant 0 : index
    %26 = vector.load %arg12[%c0_16, %c0_17, %c0_18] : memref<3x32x16xf32, #tpu.memory_space<vmem>>, vector<1x32x16xf32>
    %27 = vector.shape_cast %26 : vector<1x32x16xf32> to vector<32x16xf32>
    %cst_19 = arith.constant dense<0.000000e+00> : vector<20x16xf32>
    %28 = tpu.matmul %25, %27, %cst_19 {dimension_numbers = #tpu.dot_dimension_numbers<[1], [0], [0], [1], [0, 0, 1, 1], [], []>} : vector<20x32xf32>, vector<32x16xf32>, vector<20x16xf32> -> vector<20x16xf32>
    %c0_20 = arith.constant 0 : index
    %c0_21 = arith.constant 0 : index
    %29 = vector.load %arg2[%c0_20, %c0_21] : memref<24x2xi32, #tpu.memory_space<vmem>>, vector<24x2xi32>
    %30 = tpu.iota {dimensions = array<i32: 0>} : vector<24x2xi32>
    %c0_i32 = arith.constant 0 : i32
    %31 = vector.broadcast %c0_i32 : i32 to vector<24x2xi32>
    %c12_i32 = arith.constant 12 : i32
    %32 = vector.broadcast %c12_i32 : i32 to vector<24x2xi32>
    %33 = arith.cmpi sge, %30, %32 : vector<24x2xi32>
    %34 = arith.extui %33 : vector<24x2xi1> to vector<24x2xi32>
    %35 = arith.addi %31, %34 : vector<24x2xi32>
    %c10_i32 = arith.constant 10 : i32
    %36 = vector.broadcast %c10_i32 : i32 to vector<24x2xi32>
    %37 = arith.muli %35, %36 : vector<24x2xi32>
    %38 = arith.addi %29, %37 : vector<24x2xi32>
    %39 = vector.extract_strided_slice %38 {offsets = [0, 0], sizes = [24, 1], strides = [1, 1]} : vector<24x2xi32> to vector<24x1xi32>
    %40 = vector.extract_strided_slice %38 {offsets = [0, 1], sizes = [24, 1], strides = [1, 1]} : vector<24x2xi32> to vector<24x1xi32>
    %41 = tpu.concatenate %39, %40 in 0 : vector<24x1xi32>, vector<24x1xi32> -> vector<48x1xi32>
    %42 = tpu.iota {dimensions = array<i32: 1>} : vector<48x20xi32>
    %43 = vector.broadcast %41 : vector<48x1xi32> to vector<48x20xi32>
    %44 = arith.cmpi eq, %42, %43 : vector<48x20xi32>
    %45 = arith.extui %44 : vector<48x20xi1> to vector<48x20xi32>
    %46 = arith.sitofp %45 : vector<48x20xi32> to vector<48x20xf32>
    %47 = vector.extract_strided_slice %46 {offsets = [0, 0], sizes = [24, 20], strides = [1, 1]} : vector<48x20xf32> to vector<24x20xf32>
    %48 = tpu.transpose %47, [1, 0] : vector<24x20xf32> -> vector<20x24xf32>
    %c0_22 = arith.constant 0 : index
    %c0_23 = arith.constant 0 : index
    %49 = vector.load %arg3[%c0_22, %c0_23] : memref<24x4xf32, #tpu.memory_space<vmem>>, vector<24x4xf32>
    %cst_24 = arith.constant dense<0.000000e+00> : vector<48x32xf32>
    %50 = tpu.matmul %46, %25, %cst_24 {dimension_numbers = #tpu.dot_dimension_numbers<[1], [0], [0], [1], [0, 0, 1, 1], [], []>} : vector<48x20xf32>, vector<20x32xf32>, vector<48x32xf32> -> vector<48x32xf32>
    %51 = vector.extract_strided_slice %50 {offsets = [0, 0], sizes = [24, 32], strides = [1, 1]} : vector<48x32xf32> to vector<24x32xf32>
    %c0_25 = arith.constant 0 : index
    %c0_26 = arith.constant 0 : index
    %c0_27 = arith.constant 0 : index
    %52 = vector.load %arg8[%c0_25, %c0_26, %c0_27] : memref<2x32x32xf32, #tpu.memory_space<vmem>>, vector<1x32x32xf32>
    %53 = vector.shape_cast %52 : vector<1x32x32xf32> to vector<32x32xf32>
    %cst_28 = arith.constant dense<0.000000e+00> : vector<24x32xf32>
    %54 = tpu.matmul %51, %53, %cst_28 {dimension_numbers = #tpu.dot_dimension_numbers<[1], [0], [0], [1], [0, 0, 1, 1], [], []>} : vector<24x32xf32>, vector<32x32xf32>, vector<24x32xf32> -> vector<24x32xf32>
    %55 = vector.extract_strided_slice %50 {offsets = [24, 0], sizes = [24, 32], strides = [1, 1]} : vector<48x32xf32> to vector<24x32xf32>
    %c0_29 = arith.constant 0 : index
    %c0_30 = arith.constant 0 : index
    %c0_31 = arith.constant 0 : index
    %56 = vector.load %arg9[%c0_29, %c0_30, %c0_31] : memref<2x32x32xf32, #tpu.memory_space<vmem>>, vector<1x32x32xf32>
    %57 = vector.shape_cast %56 : vector<1x32x32xf32> to vector<32x32xf32>
    %cst_32 = arith.constant dense<0.000000e+00> : vector<24x32xf32>
    %58 = tpu.matmul %55, %57, %cst_32 {dimension_numbers = #tpu.dot_dimension_numbers<[1], [0], [0], [1], [0, 0, 1, 1], [], []>} : vector<24x32xf32>, vector<32x32xf32>, vector<24x32xf32> -> vector<24x32xf32>
    %c0_33 = arith.constant 0 : index
    %c0_34 = arith.constant 0 : index
    %c0_35 = arith.constant 0 : index
    %59 = vector.load %arg10[%c0_33, %c0_34, %c0_35] : memref<2x4x32xf32, #tpu.memory_space<vmem>>, vector<1x4x32xf32>
    %60 = vector.shape_cast %59 : vector<1x4x32xf32> to vector<4x32xf32>
    %cst_36 = arith.constant dense<0.000000e+00> : vector<24x32xf32>
    %61 = tpu.matmul %49, %60, %cst_36 {dimension_numbers = #tpu.dot_dimension_numbers<[1], [0], [0], [1], [0, 0, 1, 1], [], []>} : vector<24x4xf32>, vector<4x32xf32>, vector<24x32xf32> -> vector<24x32xf32>
    %62 = arith.addf %54, %58 : vector<24x32xf32>
    %63 = arith.addf %62, %61 : vector<24x32xf32>
    %c0_37 = arith.constant 0 : index
    %c0_38 = arith.constant 0 : index
    %c0_39 = arith.constant 0 : index
    %64 = vector.load %arg11[%c0_37, %c0_38, %c0_39] : memref<2x1x32xf32, #tpu.memory_space<vmem>>, vector<1x1x32xf32>
    %65 = vector.shape_cast %64 : vector<1x1x32xf32> to vector<1x32xf32>
    %66 = vector.broadcast %65 : vector<1x32xf32> to vector<24x32xf32>
    %67 = arith.addf %63, %66 : vector<24x32xf32>
    %cst_40 = arith.constant 0.000000e+00 : f32
    %68 = vector.broadcast %cst_40 : f32 to vector<24x32xf32>
    %69 = arith.maximumf %67, %68 : vector<24x32xf32>
    %cst_41 = arith.constant dense<0.000000e+00> : vector<20x32xf32>
    %70 = tpu.matmul %48, %69, %cst_41 {dimension_numbers = #tpu.dot_dimension_numbers<[1], [0], [0], [1], [0, 0, 1, 1], [], []>} : vector<20x24xf32>, vector<24x32xf32>, vector<20x32xf32> -> vector<20x32xf32>
    %c1 = arith.constant 1 : index
    %c0_42 = arith.constant 0 : index
    %c0_43 = arith.constant 0 : index
    %71 = vector.load %arg12[%c1, %c0_42, %c0_43] : memref<3x32x16xf32, #tpu.memory_space<vmem>>, vector<1x32x16xf32>
    %72 = vector.shape_cast %71 : vector<1x32x16xf32> to vector<32x16xf32>
    %cst_44 = arith.constant dense<0.000000e+00> : vector<20x16xf32>
    %73 = tpu.matmul %70, %72, %cst_44 {dimension_numbers = #tpu.dot_dimension_numbers<[1], [0], [0], [1], [0, 0, 1, 1], [], []>} : vector<20x32xf32>, vector<32x16xf32>, vector<20x16xf32> -> vector<20x16xf32>
    %74 = arith.addf %28, %73 : vector<20x16xf32>
    %cst_45 = arith.constant dense<0.000000e+00> : vector<48x32xf32>
    %75 = tpu.matmul %46, %70, %cst_45 {dimension_numbers = #tpu.dot_dimension_numbers<[1], [0], [0], [1], [0, 0, 1, 1], [], []>} : vector<48x20xf32>, vector<20x32xf32>, vector<48x32xf32> -> vector<48x32xf32>
    %76 = vector.extract_strided_slice %75 {offsets = [0, 0], sizes = [24, 32], strides = [1, 1]} : vector<48x32xf32> to vector<24x32xf32>
    %c1_46 = arith.constant 1 : index
    %c0_47 = arith.constant 0 : index
    %c0_48 = arith.constant 0 : index
    %77 = vector.load %arg8[%c1_46, %c0_47, %c0_48] : memref<2x32x32xf32, #tpu.memory_space<vmem>>, vector<1x32x32xf32>
    %78 = vector.shape_cast %77 : vector<1x32x32xf32> to vector<32x32xf32>
    %cst_49 = arith.constant dense<0.000000e+00> : vector<24x32xf32>
    %79 = tpu.matmul %76, %78, %cst_49 {dimension_numbers = #tpu.dot_dimension_numbers<[1], [0], [0], [1], [0, 0, 1, 1], [], []>} : vector<24x32xf32>, vector<32x32xf32>, vector<24x32xf32> -> vector<24x32xf32>
    %80 = vector.extract_strided_slice %75 {offsets = [24, 0], sizes = [24, 32], strides = [1, 1]} : vector<48x32xf32> to vector<24x32xf32>
    %c1_50 = arith.constant 1 : index
    %c0_51 = arith.constant 0 : index
    %c0_52 = arith.constant 0 : index
    %81 = vector.load %arg9[%c1_50, %c0_51, %c0_52] : memref<2x32x32xf32, #tpu.memory_space<vmem>>, vector<1x32x32xf32>
    %82 = vector.shape_cast %81 : vector<1x32x32xf32> to vector<32x32xf32>
    %cst_53 = arith.constant dense<0.000000e+00> : vector<24x32xf32>
    %83 = tpu.matmul %80, %82, %cst_53 {dimension_numbers = #tpu.dot_dimension_numbers<[1], [0], [0], [1], [0, 0, 1, 1], [], []>} : vector<24x32xf32>, vector<32x32xf32>, vector<24x32xf32> -> vector<24x32xf32>
    %c1_54 = arith.constant 1 : index
    %c0_55 = arith.constant 0 : index
    %c0_56 = arith.constant 0 : index
    %84 = vector.load %arg10[%c1_54, %c0_55, %c0_56] : memref<2x4x32xf32, #tpu.memory_space<vmem>>, vector<1x4x32xf32>
    %85 = vector.shape_cast %84 : vector<1x4x32xf32> to vector<4x32xf32>
    %cst_57 = arith.constant dense<0.000000e+00> : vector<24x32xf32>
    %86 = tpu.matmul %49, %85, %cst_57 {dimension_numbers = #tpu.dot_dimension_numbers<[1], [0], [0], [1], [0, 0, 1, 1], [], []>} : vector<24x4xf32>, vector<4x32xf32>, vector<24x32xf32> -> vector<24x32xf32>
    %87 = arith.addf %79, %83 : vector<24x32xf32>
    %88 = arith.addf %87, %86 : vector<24x32xf32>
    %c1_58 = arith.constant 1 : index
    %c0_59 = arith.constant 0 : index
    %c0_60 = arith.constant 0 : index
    %89 = vector.load %arg11[%c1_58, %c0_59, %c0_60] : memref<2x1x32xf32, #tpu.memory_space<vmem>>, vector<1x1x32xf32>
    %90 = vector.shape_cast %89 : vector<1x1x32xf32> to vector<1x32xf32>
    %91 = vector.broadcast %90 : vector<1x32xf32> to vector<24x32xf32>
    %92 = arith.addf %88, %91 : vector<24x32xf32>
    %cst_61 = arith.constant 0.000000e+00 : f32
    %93 = vector.broadcast %cst_61 : f32 to vector<24x32xf32>
    %94 = arith.maximumf %92, %93 : vector<24x32xf32>
    %cst_62 = arith.constant dense<0.000000e+00> : vector<20x32xf32>
    %95 = tpu.matmul %48, %94, %cst_62 {dimension_numbers = #tpu.dot_dimension_numbers<[1], [0], [0], [1], [0, 0, 1, 1], [], []>} : vector<20x24xf32>, vector<24x32xf32>, vector<20x32xf32> -> vector<20x32xf32>
    %c2 = arith.constant 2 : index
    %c0_63 = arith.constant 0 : index
    %c0_64 = arith.constant 0 : index
    %96 = vector.load %arg12[%c2, %c0_63, %c0_64] : memref<3x32x16xf32, #tpu.memory_space<vmem>>, vector<1x32x16xf32>
    %97 = vector.shape_cast %96 : vector<1x32x16xf32> to vector<32x16xf32>
    %cst_65 = arith.constant dense<0.000000e+00> : vector<20x16xf32>
    %98 = tpu.matmul %95, %97, %cst_65 {dimension_numbers = #tpu.dot_dimension_numbers<[1], [0], [0], [1], [0, 0, 1, 1], [], []>} : vector<20x32xf32>, vector<32x16xf32>, vector<20x16xf32> -> vector<20x16xf32>
    %99 = arith.addf %74, %98 : vector<20x16xf32>
    %c0_66 = arith.constant 0 : index
    %c0_67 = arith.constant 0 : index
    %100 = vector.load %arg13[%c0_66, %c0_67] : memref<1x16xf32, #tpu.memory_space<vmem>>, vector<1x16xf32>
    %101 = vector.broadcast %100 : vector<1x16xf32> to vector<20x16xf32>
    %102 = arith.addf %99, %101 : vector<20x16xf32>
    %cst_68 = arith.constant 0.000000e+00 : f32
    %103 = vector.broadcast %cst_68 : f32 to vector<20x16xf32>
    %104 = arith.cmpf oge, %102, %103 : vector<20x16xf32>
    %cst_69 = arith.constant 1.000000e-01 : f32
    %105 = vector.broadcast %cst_69 : f32 to vector<20x16xf32>
    %106 = arith.mulf %105, %102 : vector<20x16xf32>
    %107 = arith.select %104, %102, %106 : vector<20x16xi1>, vector<20x16xf32>
    %c0_70 = arith.constant 0 : index
    %c0_71 = arith.constant 0 : index
    %108 = vector.load %arg14[%c0_70, %c0_71] : memref<20x16xf32, #tpu.memory_space<vmem>>, vector<20x16xf32>
    tpu.vector_store %arg14[%c0_70, %c0_71], %107 {strides = array<i32>} : memref<20x16xf32, #tpu.memory_space<vmem>>, vector<20x16xf32>,
    return
  }
  func.func @transform_0(%arg0: i32) -> (i32, i32) {
    %c0_i32 = arith.constant 0 : i32
    %c0_i32_0 = arith.constant 0 : i32
    %c0_i32_1 = arith.constant 0 : i32
    return %c0_i32, %c0_i32_0 : i32, i32
  }
  func.func @transform_1(%arg0: i32) -> (i32, i32) {
    %c0_i32 = arith.constant 0 : i32
    %c0_i32_0 = arith.constant 0 : i32
    %c0_i32_1 = arith.constant 0 : i32
    return %c0_i32, %c0_i32_0 : i32, i32
  }
  func.func @transform_2(%arg0: i32) -> (i32, i32) {
    %c0_i32 = arith.constant 0 : i32
    %c0_i32_0 = arith.constant 0 : i32
    %c0_i32_1 = arith.constant 0 : i32
    return %c0_i32, %c0_i32_0 : i32, i32
  }
  func.func @transform_3(%arg0: i32) -> (i32, i32) {
    %c0_i32 = arith.constant 0 : i32
    %c0_i32_0 = arith.constant 0 : i32
    %c0_i32_1 = arith.constant 0 : i32
    return %c0_i32, %c0_i32_0 : i32, i32
  }
  func.func @transform_4(%arg0: i32) -> (i32, i32) {
    %c0_i32 = arith.constant 0 : i32
    %c0_i32_0 = arith.constant 0 : i32
    %c0_i32_1 = arith.constant 0 : i32
    return %c0_i32, %c0_i32_0 : i32, i32
  }
  func.func @transform_5(%arg0: i32) -> (i32, i32) {
    %c0_i32 = arith.constant 0 : i32
    %c0_i32_0 = arith.constant 0 : i32
    %c0_i32_1 = arith.constant 0 : i32
    return %c0_i32, %c0_i32_0 : i32, i32
  }
  func.func @transform_6(%arg0: i32) -> (i32, i32) {
    %c0_i32 = arith.constant 0 : i32
    %c0_i32_0 = arith.constant 0 : i32
    %c0_i32_1 = arith.constant 0 : i32
    return %c0_i32, %c0_i32_0 : i32, i32
  }
  func.func @transform_7(%arg0: i32) -> (i32, i32, i32) {
    %c0_i32 = arith.constant 0 : i32
    %c0_i32_0 = arith.constant 0 : i32
    %c0_i32_1 = arith.constant 0 : i32
    %c0_i32_2 = arith.constant 0 : i32
    return %c0_i32, %c0_i32_0, %c0_i32_1 : i32, i32, i32
  }
  func.func @transform_8(%arg0: i32) -> (i32, i32, i32) {
    %c0_i32 = arith.constant 0 : i32
    %c0_i32_0 = arith.constant 0 : i32
    %c0_i32_1 = arith.constant 0 : i32
    %c0_i32_2 = arith.constant 0 : i32
    return %c0_i32, %c0_i32_0, %c0_i32_1 : i32, i32, i32
  }
  func.func @transform_9(%arg0: i32) -> (i32, i32, i32) {
    %c0_i32 = arith.constant 0 : i32
    %c0_i32_0 = arith.constant 0 : i32
    %c0_i32_1 = arith.constant 0 : i32
    %c0_i32_2 = arith.constant 0 : i32
    return %c0_i32, %c0_i32_0, %c0_i32_1 : i32, i32, i32
  }
  func.func @transform_10(%arg0: i32) -> (i32, i32, i32) {
    %c0_i32 = arith.constant 0 : i32
    %c0_i32_0 = arith.constant 0 : i32
    %c0_i32_1 = arith.constant 0 : i32
    %c0_i32_2 = arith.constant 0 : i32
    return %c0_i32, %c0_i32_0, %c0_i32_1 : i32, i32, i32
  }
  func.func @transform_11(%arg0: i32) -> (i32, i32, i32) {
    %c0_i32 = arith.constant 0 : i32
    %c0_i32_0 = arith.constant 0 : i32
    %c0_i32_1 = arith.constant 0 : i32
    %c0_i32_2 = arith.constant 0 : i32
    return %c0_i32, %c0_i32_0, %c0_i32_1 : i32, i32, i32
  }
  func.func @transform_12(%arg0: i32) -> (i32, i32) {
    %c0_i32 = arith.constant 0 : i32
    %c0_i32_0 = arith.constant 0 : i32
    %c0_i32_1 = arith.constant 0 : i32
    return %c0_i32, %c0_i32_0 : i32, i32
  }
  func.func @transform_13(%arg0: i32) -> (i32, i32) {
    %c0_i32 = arith.constant 0 : i32
    %c0_i32_0 = arith.constant 0 : i32
    %c0_i32_1 = arith.constant 0 : i32
    return %c0_i32, %c0_i32_0 : i32, i32
  }
}

</mosaic_0001>

<llo_original>
// kernel: gnn_encoder_forward.1
$region0: #{gnn_encoder_forward.1}
  #allocation0 [shape = 'u32[]', space=smem, size = 0x4, offset = 0x4, fixed_abs, tag = 'smem constant byte address 0x4 - core index']
  #allocation1 [shape = 'u32[144,128]{1,0:T(1,128)}', space=vmem, size = 0x12000, scoped, tag = 'internal scratch']
  %s0 = inlined_call_operand.vmem [shape: f32[20,16], index: 0, kind: input, shape index: {}]
  %s1 = inlined_call_operand.vmem [shape: s32[24,2], index: 1, kind: input, shape index: {}]
  %s2 = inlined_call_operand.vmem [shape: f32[24,4], index: 2, kind: input, shape index: {}]
  %s3 = inlined_call_operand.vmem [shape: f32[16,32], index: 3, kind: input, shape index: {}]
  %s4 = inlined_call_operand.vmem [shape: f32[1,32], index: 4, kind: input, shape index: {}]
  %s5 = inlined_call_operand.vmem [shape: f32[32,32], index: 5, kind: input, shape index: {}]
  %s6 = inlined_call_operand.vmem [shape: f32[1,32], index: 6, kind: input, shape index: {}]
  %s7 = inlined_call_operand.vmem [shape: f32[2,32,32], index: 7, kind: input, shape index: {}]
  %s8 = inlined_call_operand.vmem [shape: f32[2,32,32], index: 8, kind: input, shape index: {}]
  %s9 = inlined_call_operand.vmem [shape: f32[2,4,32], index: 9, kind: input, shape index: {}]
  %s10 = inlined_call_operand.vmem [shape: f32[2,1,32], index: 10, kind: input, shape index: {}]
  %s11 = inlined_call_operand.vmem [shape: f32[3,32,16], index: 11, kind: input, shape index: {}]
  %s12 = inlined_call_operand.vmem [shape: f32[1,16], index: 12, kind: input, shape index: {}]
  %s13 = inlined_call_operand.vmem [shape: f32[20,16], index: 13, kind: output, shape index: {}]
  %s14 = sld [smem:[#allocation0]]
  $region62: #{gnn_encoder_forward.1} parent=0
    _
  %s16 = ssub.s32 1, %s14
  %s17 = scalar_select 0, %s16, %s14
  // Predicated region
  $region2: #{gnn_encoder_forward.1} parent=0 // pred_check
    _
  $region3: #{gnn_encoder_forward.1} parent=0 // pred_check_branch
    %19 = sbr.rel (0) target = $region5
  $region4: #{gnn_encoder_forward.1} parent=0 // pred_region
    _
  $region5: #{gnn_encoder_forward.1} parent=0 // pred_fallthru
    _
  // Predicated region
  $region6: #{gnn_encoder_forward.1} parent=0 // pred_check
    _
  $region7: #{gnn_encoder_forward.1} parent=0 // pred_check_branch
    %21 = sbr.rel (0) target = $region9
  $region8: #{gnn_encoder_forward.1} parent=0 // pred_region
    _
  $region9: #{gnn_encoder_forward.1} parent=0 // pred_fallthru
    _
  // Predicated region
  $region10: #{gnn_encoder_forward.1} parent=0 // pred_check
    _
  $region11: #{gnn_encoder_forward.1} parent=0 // pred_check_branch
    %23 = sbr.rel (0) target = $region13
  $region12: #{gnn_encoder_forward.1} parent=0 // pred_region
    _
  $region13: #{gnn_encoder_forward.1} parent=0 // pred_fallthru
    _
  // Predicated region
  $region14: #{gnn_encoder_forward.1} parent=0 // pred_check
    _
  $region15: #{gnn_encoder_forward.1} parent=0 // pred_check_branch
    %25 = sbr.rel (0) target = $region17
  $region16: #{gnn_encoder_forward.1} parent=0 // pred_region
    _
  $region17: #{gnn_encoder_forward.1} parent=0 // pred_fallthru
    _
  // Predicated region
  $region18: #{gnn_encoder_forward.1} parent=0 // pred_check
    _
  $region19: #{gnn_encoder_forward.1} parent=0 // pred_check_branch
    %27 = sbr.rel (0) target = $region21
  $region20: #{gnn_encoder_forward.1} parent=0 // pred_region
    _
  $region21: #{gnn_encoder_forward.1} parent=0 // pred_fallthru
    _
  // Predicated region
  $region22: #{gnn_encoder_forward.1} parent=0 // pred_check
    _
  $region23: #{gnn_encoder_forward.1} parent=0 // pred_check_branch
    %29 = sbr.rel (0) target = $region25
  $region24: #{gnn_encoder_forward.1} parent=0 // pred_region
    _
  $region25: #{gnn_encoder_forward.1} parent=0 // pred_fallthru
    _
  // Predicated region
  $region26: #{gnn_encoder_forward.1} parent=0 // pred_check
    _
  $region27: #{gnn_encoder_forward.1} parent=0 // pred_check_branch
    %31 = sbr.rel (0) target = $region29
  $region28: #{gnn_encoder_forward.1} parent=0 // pred_region
    _
  $region29: #{gnn_encoder_forward.1} parent=0 // pred_fallthru
    _
  // Predicated region
  $region30: #{gnn_encoder_forward.1} parent=0 // pred_check
    _
  $region31: #{gnn_encoder_forward.1} parent=0 // pred_check_branch
    %33 = sbr.rel (0) target = $region33
  $region32: #{gnn_encoder_forward.1} parent=0 // pred_region
    _
  $region33: #{gnn_encoder_forward.1} parent=0 // pred_fallthru
    _
  // Predicated region
  $region34: #{gnn_encoder_forward.1} parent=0 // pred_check
    _
  $region35: #{gnn_encoder_forward.1} parent=0 // pred_check_branch
    %35 = sbr.rel (0) target = $region37
  $region36: #{gnn_encoder_forward.1} parent=0 // pred_region
    _
  $region37: #{gnn_encoder_forward.1} parent=0 // pred_fallthru
    _
  // Predicated region
  $region38: #{gnn_encoder_forward.1} parent=0 // pred_check
    _
  $region39: #{gnn_encoder_forward.1} parent=0 // pred_check_branch
    %37 = sbr.rel (0) target = $region41
  $region40: #{gnn_encoder_forward.1} parent=0 // pred_region
    _
  $region41: #{gnn_encoder_forward.1} parent=0 // pred_fallthru
    _
  // Predicated region
  $region42: #{gnn_encoder_forward.1} parent=0 // pred_check
    _
  $region43: #{gnn_encoder_forward.1} parent=0 // pred_check_branch
    %39 = sbr.rel (0) target = $region45
  $region44: #{gnn_encoder_forward.1} parent=0 // pred_region
    _
  $region45: #{gnn_encoder_forward.1} parent=0 // pred_fallthru
    _
  // Predicated region
  $region46: #{gnn_encoder_forward.1} parent=0 // pred_check
    _
  $region47: #{gnn_encoder_forward.1} parent=0 // pred_check_branch
    %41 = sbr.rel (0) target = $region49
  $region48: #{gnn_encoder_forward.1} parent=0 // pred_region
    _
  $region49: #{gnn_encoder_forward.1} parent=0 // pred_fallthru
    _
  // Predicated region
  $region50: #{gnn_encoder_forward.1} parent=0 // pred_check
    _
  $region51: #{gnn_encoder_forward.1} parent=0 // pred_check_branch
    %43 = sbr.rel (0) target = $region53
  $region52: #{gnn_encoder_forward.1} parent=0 // pred_region
    _
  $region53: #{gnn_encoder_forward.1} parent=0 // pred_fallthru
    _
  %v44 = vld [vmem:[%s0] sm:$0xff]
  %v45 = vld [vmem:[%s0 + $0x8] sm:$0xff]
  %v46 = vld [vmem:[%s0 + $0x10] sm:$0xf]
  %v47 = vld [vmem:[%s3] sm:$0xff]
  %v48 = vld [vmem:[%s3 + $0x8] sm:$0xff]
  %v49 = vld [vmem:[%s4] sm:$0x1]
  %v51 = vlaneseq
  %v52 = vshrl.u32 %v51, 7
  %v53 = vsub.s32 0, %v52
  %v54 = vrot.slane %v49, %v53
  %vm56 = vcmask 130048
  %v58 = vsel %vm56, %v44, 0
  %v61 = vsel %vm56, %v45, 0
  %v64 = vsel %vm56, %v46, 0
  %66 = vmatprep.subr.mxu0 0.0
  %67 = vmatpush1.msra.mxu0 %v47
  %68 = vmatprep.subr.mxu0 0.0
  %69 = vmatpush1.msra.mxu0 %v48
  %70 = vmatprep.subr.mxu0 0.0
  %71 = vmatpush1.msra.mxu0 0.0
  %72 = vmatprep.subr.mxu0 0.0
  %73 = vmatpush1.msra.mxu0 0.0
  %74 = vmatprep.subr.mxu0 0.0
  %75 = vmatpush1.msra.mxu0 0.0
  %76 = vmatprep.subr.mxu0 0.0
  %77 = vmatpush1.msra.mxu0 0.0
  %78 = vmatprep.subr.mxu0 0.0
  %79 = vmatpush1.msra.mxu0 0.0
  %80 = vmatprep.subr.mxu0 0.0
  %81 = vmatpush1.msra.mxu0 0.0
  %82 = vmatprep.subr.mxu0 0.0
  %83 = vmatpush1.msra.mxu0 0.0
  %84 = vmatprep.subr.mxu0 0.0
  %85 = vmatpush1.msra.mxu0 0.0
  %86 = vmatprep.subr.mxu0 0.0
  %87 = vmatpush1.msra.mxu0 0.0
  %88 = vmatprep.subr.mxu0 0.0
  %89 = vmatpush1.msra.mxu0 0.0
  %90 = vmatprep.subr.mxu0 0.0
  %91 = vmatpush1.msra.mxu0 0.0
  %92 = vmatprep.subr.mxu0 0.0
  %93 = vmatpush1.msra.mxu0 0.0
  %94 = vmatprep.subr.mxu0 0.0
  %95 = vmatpush1.msra.mxu0 0.0
  %96 = vmatprep.subr.mxu0 0.0
  %97 = vmatpush1.msra.mxu0 0.0
  %98 = vmatprep.subr.mxu0 0.0
  %99 = vmatpush1.msra.mxu0 0.0
  %100 = vmatprep.subr.mxu0 0.0
  %101 = vmatpush1.msra.mxu0 0.0
  %102 = vmatprep.subr.mxu0 0.0
  %103 = vmatpush1.msra.mxu0 0.0
  %104 = vmatprep.subr.mxu0 0.0
  %105 = vmatpush1.msra.mxu0 0.0
  %106 = vmatprep.subr.mxu0 0.0
  %107 = vmatpush1.msra.mxu0 0.0
  %108 = vmatprep.subr.mxu0 0.0
  %109 = vmatpush1.msra.mxu0 0.0
  %110 = vmatprep.subr.mxu0 0.0
  %111 = vmatpush1.msra.mxu0 0.0
  %112 = vmatprep.subr.mxu0 0.0
  %113 = vmatpush1.msra.mxu0 0.0
  %114 = vmatprep.subr.mxu0 0.0
  %115 = vmatpush1.msra.mxu0 0.0
  %116 = vmatprep.subr.mxu0 0.0
  %117 = vmatpush1.msra.mxu0 0.0
  %118 = vmatprep.subr.mxu0 0.0
  %119 = vmatpush1.msra.mxu0 0.0
  %120 = vmatprep.subr.mxu0 0.0
  %121 = vmatpush1.msra.mxu0 0.0
  %122 = vmatprep.subr.mxu0 0.0
  %123 = vmatpush1.msra.mxu0 0.0
  %124 = vmatprep.subr.mxu0 0.0
  %125 = vmatpush1.msra.mxu0 0.0
  %126 = vmatprep.subr.mxu0 0.0
  %127 = vmatpush1.msra.mxu0 0.0
  %128 = vmatprep.subr.mxu0 0.0
  %129 = vmatpush1.msra.mxu0 0.0
  %130 = vmatprep.mubr.f32.mxu0 0.0
  %131 = vmatmul.mubr.f32.gmra.mrb[0].mxu0 %v58
  %v132 = vpop.f32.mrb[0].mxu0
  %v133 = vadd.f32 %v54, %v132
  %v134 = vpop.f32.mrb[0].mxu0
  %135 = vmatprep.mubr.f32.mxu0 0.0
  %136 = vmatmul.mubr.f32.gmra.mrb[0].mxu0 %v61
  %v137 = vpop.f32.mrb[0].mxu0
  %v138 = vadd.f32 %v54, %v137
  %v139 = vpop.f32.mrb[0].mxu0
  %140 = vmatprep.mubr.f32.mxu0 0.0
  %141 = vmatmul.mubr.f32.gmra.mrb[0].mxu0 %v64
  %v142 = vpop.f32.mrb[0].mxu0
  %v143 = vadd.f32 %v54, %v142
  %v144 = vpop.f32.mrb[0].mxu0
  %145 = vdwg.mxu0
  %vm146 = vcmp.ge.f32.partialorder %v133, 0.0
  %vm147 = vcmp.ge.f32.partialorder %v138, 0.0
  %vm148 = vcmp.ge.f32.partialorder %v143, 0.0
  %v149 = vmul.f32 %v133, 0.1
  %v150 = vmul.f32 %v138, 0.1
  %v151 = vmul.f32 %v143, 0.1
  %v152 = vsel %vm146, %v133, %v149
  %v153 = vsel %vm147, %v138, %v150
  %v154 = vsel %vm148, %v143, %v151
  %vm155 = vcmp.ge.f32.partialorder %v152, 0.0
  %vm156 = vcmp.ge.f32.partialorder %v153, 0.0
  %vm157 = vcmp.ge.f32.partialorder %v154, 0.0
  %v158 = vmul.f32 %v152, 0.1
  %v159 = vmul.f32 %v153, 0.1
  %v160 = vmul.f32 %v154, 0.1
  %v161 = vsel %vm155, %v152, %v158
  %v162 = vsel %vm156, %v153, %v159
  %v163 = vsel %vm157, %v154, %v160
  %v164 = vld [vmem:[%s5] sm:$0xff]
  %v165 = vld [vmem:[%s5 + $0x8] sm:$0xff]
  %v166 = vld [vmem:[%s5 + $0x10] sm:$0xff]
  %v167 = vld [vmem:[%s5 + $0x18] sm:$0xff]
  %v168 = vld [vmem:[%s6] sm:$0x1]
  %v170 = vlaneseq
  %v171 = vshrl.u32 %v170, 7
  %v172 = vsub.s32 0, %v171
  %v173 = vrot.slane %v168, %v172
  %vm175 = vcmask 261120
  %v177 = vsel %vm175, %v161, 0
  %v180 = vsel %vm175, %v162, 0
  %v183 = vsel %vm175, %v163, 0
  %185 = vmatprep.subr.mxu0 0.0
  %186 = vmatpush1.msra.mxu0 %v164
  %187 = vmatprep.subr.mxu0 0.0
  %188 = vmatpush1.msra.mxu0 %v165
  %189 = vmatprep.subr.mxu0 0.0
  %190 = vmatpush1.msra.mxu0 %v166
  %191 = vmatprep.subr.mxu0 0.0
  %192 = vmatpush1.msra.mxu0 %v167
  %193 = vmatprep.subr.mxu0 0.0
  %194 = vmatpush1.msra.mxu0 0.0
  %195 = vmatprep.subr.mxu0 0.0
  %196 = vmatpush1.msra.mxu0 0.0
  %197 = vmatprep.subr.mxu0 0.0
  %198 = vmatpush1.msra.mxu0 0.0
  %199 = vmatprep.subr.mxu0 0.0
  %200 = vmatpush1.msra.mxu0 0.0
  %201 = vmatprep.subr.mxu0 0.0
  %202 = vmatpush1.msra.mxu0 0.0
  %203 = vmatprep.subr.mxu0 0.0
  %204 = vmatpush1.msra.mxu0 0.0
  %205 = vmatprep.subr.mxu0 0.0
  %206 = vmatpush1.msra.mxu0 0.0
  %207 = vmatprep.subr.mxu0 0.0
  %208 = vmatpush1.msra.mxu0 0.0
  %209 = vmatprep.subr.mxu0 0.0
  %210 = vmatpush1.msra.mxu0 0.0
  %211 = vmatprep.subr.mxu0 0.0
  %212 = vmatpush1.msra.mxu0 0.0
  %213 = vmatprep.subr.mxu0 0.0
  %214 = vmatpush1.msra.mxu0 0.0
  %215 = vmatprep.subr.mxu0 0.0
  %216 = vmatpush1.msra.mxu0 0.0
  %217 = vmatprep.subr.mxu0 0.0
  %218 = vmatpush1.msra.mxu0 0.0
  %219 = vmatprep.subr.mxu0 0.0
  %220 = vmatpush1.msra.mxu0 0.0
  %221 = vmatprep.subr.mxu0 0.0
  %222 = vmatpush1.msra.mxu0 0.0
  %223 = vmatprep.subr.mxu0 0.0
  %224 = vmatpush1.msra.mxu0 0.0
  %225 = vmatprep.subr.mxu0 0.0
  %226 = vmatpush1.msra.mxu0 0.0
  %227 = vmatprep.subr.mxu0 0.0
  %228 = vmatpush1.msra.mxu0 0.0
  %229 = vmatprep.subr.mxu0 0.0
  %230 = vmatpush1.msra.mxu0 0.0
  %231 = vmatprep.subr.mxu0 0.0
  %232 = vmatpush1.msra.mxu0 0.0
  %233 = vmatprep.subr.mxu0 0.0
  %234 = vmatpush1.msra.mxu0 0.0
  %235 = vmatprep.subr.mxu0 0.0
  %236 = vmatpush1.msra.mxu0 0.0
  %237 = vmatprep.subr.mxu0 0.0
  %238 = vmatpush1.msra.mxu0 0.0
  %239 = vmatprep.subr.mxu0 0.0
  %240 = vmatpush1.msra.mxu0 0.0
  %241 = vmatprep.subr.mxu0 0.0
  %242 = vmatpush1.msra.mxu0 0.0
  %243 = vmatprep.subr.mxu0 0.0
  %244 = vmatpush1.msra.mxu0 0.0
  %245 = vmatprep.subr.mxu0 0.0
  %246 = vmatpush1.msra.mxu0 0.0
  %247 = vmatprep.subr.mxu0 0.0
  %248 = vmatpush1.msra.mxu0 0.0
  %249 = vmatprep.mubr.f32.mxu0 0.0
  %250 = vmatmul.mubr.f32.gmra.mrb[0].mxu0 %v177
  %v251 = vpop.f32.mrb[0].mxu0
  %v252 = vadd.f32 %v173, %v251
  %v253 = vpop.f32.mrb[0].mxu0
  %254 = vmatprep.mubr.f32.mxu0 0.0
  %255 = vmatmul.mubr.f32.gmra.mrb[0].mxu0 %v180
  %v256 = vpop.f32.mrb[0].mxu0
  %v257 = vadd.f32 %v173, %v256
  %v258 = vpop.f32.mrb[0].mxu0
  %259 = vmatprep.mubr.f32.mxu0 0.0
  %260 = vmatmul.mubr.f32.gmra.mrb[0].mxu0 %v183
  %v261 = vpop.f32.mrb[0].mxu0
  %v262 = vadd.f32 %v173, %v261
  %v263 = vpop.f32.mrb[0].mxu0
  %264 = vdwg.mxu0
  %vm265 = vcmp.ge.f32.partialorder %v252, 0.0
  %vm266 = vcmp.ge.f32.partialorder %v257, 0.0
  %vm267 = vcmp.ge.f32.partialorder %v262, 0.0
  %v268 = vmul.f32 %v252, 0.1
  %v269 = vmul.f32 %v257, 0.1
  %v270 = vmul.f32 %v262, 0.1
  %v271 = vsel %vm265, %v252, %v268
  %v272 = vsel %vm266, %v257, %v269
  %v273 = vsel %vm267, %v262, %v270
  %v274 = vld [vmem:[%s11] sm:$0xff]
  %v275 = vld [vmem:[%s11 + $0x8] sm:$0xff]
  %v276 = vld [vmem:[%s11 + $0x10] sm:$0xff]
  %v277 = vld [vmem:[%s11 + $0x18] sm:$0xff]
  %v278 = vld [vmem:[%s1] sm:$0xff]
  %v279 = vld [vmem:[%s1 + $0x8] sm:$0xff]
  %v280 = vld [vmem:[%s1 + $0x10] sm:$0xff]
  %v281 = vlaneseq
  %v282 = vshrl.u32 %v281, 7
  %v283 = vadd.s32 %v282, 8
  %v284 = vadd.s32 %v282, 16
  %vm285 = vcmp.ge.s32.totalorder %v282, 12
  %vm286 = vcmp.ge.s32.totalorder %v283, 12
  %vm287 = vcmp.ge.s32.totalorder %v284, 12
  %v288 = vsel %vm285, 1, 0
  %v289 = vsel %vm286, 1, 0
  %v290 = vsel %vm287, 1, 0
  %v291 = vmul.u32 %v288, 10
  %v292 = vmul.u32 %v289, 10
  %v293 = vmul.u32 %v290, 10
  %v294 = vadd.s32 %v278, %v291
  %v295 = vadd.s32 %v279, %v292
  %v296 = vadd.s32 %v280, %v293
  %297 = vrot.lane.b32.xlu0 %v294, 127
  %v298 = vpop.permute.xlu0 %297
  %299 = vrot.lane.b32.xlu0 %v295, 127
  %v300 = vpop.permute.xlu0 %299
  %301 = vrot.lane.b32.xlu0 %v296, 127
  %v302 = vpop.permute.xlu0 %301
  %v303 = vlaneseq
  %v304 = vand.u32 %v303, 127
  %305 = vset.pattern.permute.xlu0 0
  %306 = vperm.xlu0 %305, %v294
  %v307 = vpop.permute.xlu0 %306
  %308 = vset.pattern.permute.xlu0 0
  %309 = vperm.xlu0 %308, %v295
  %v310 = vpop.permute.xlu0 %309
  %311 = vset.pattern.permute.xlu0 0
  %312 = vperm.xlu0 %311, %v296
  %v313 = vpop.permute.xlu0 %312
  %314 = vset.pattern.permute.xlu0 0
  %315 = vperm.xlu0 %314, %v298
  %v316 = vpop.permute.xlu0 %315
  %317 = vset.pattern.permute.xlu0 0
  %318 = vperm.xlu0 %317, %v300
  %v319 = vpop.permute.xlu0 %318
  %320 = vset.pattern.permute.xlu0 0
  %321 = vperm.xlu0 %320, %v302
  %v322 = vpop.permute.xlu0 %321
  %vm323 = vcmp.eq.s32.totalorder %v304, %v307
  %vm324 = vcmp.eq.s32.totalorder %v304, %v310
  %vm325 = vcmp.eq.s32.totalorder %v304, %v313
  %vm326 = vcmp.eq.s32.totalorder %v304, %v316
  %vm327 = vcmp.eq.s32.totalorder %v304, %v319
  %vm328 = vcmp.eq.s32.totalorder %v304, %v322
  %v329 = vsel %vm323, 1, 0
  %v330 = vsel %vm324, 1, 0
  %v331 = vsel %vm325, 1, 0
  %v332 = vsel %vm326, 1, 0
  %v333 = vsel %vm327, 1, 0
  %v334 = vsel %vm328, 1, 0
  %v335 = vcvt.s32.f32 %v329
  %v336 = vcvt.s32.f32 %v330
  %v337 = vcvt.s32.f32 %v331
  %v338 = vcvt.s32.f32 %v332
  %v339 = vcvt.s32.f32 %v333
  %v340 = vcvt.s32.f32 %v334
  %341 = vxpose.xlu0.b32.start [1/16] %v335, 128
  %342 = vxpose.xlu0.b32.cont [2/16] %v336, 128
  %343 = vxpose.xlu0.b32.cont [3/16] %v337, 128
  %344 = vxpose.xlu0.b32.cont [4/16] 0.0, 128
  %345 = vxpose.xlu0.b32.cont [5/16] 0.0, 128
  %346 = vxpose.xlu0.b32.cont [6/16] 0.0, 128
  %347 = vxpose.xlu0.b32.cont [7/16] 0.0, 128
  %348 = vxpose.xlu0.b32.cont [8/16] 0.0, 128
  %349 = vxpose.xlu0.b32.cont [9/16] 0.0, 128
  %350 = vxpose.xlu0.b32.cont [10/16] 0.0, 128
  %351 = vxpose.xlu0.b32.cont [11/16] 0.0, 128
  %352 = vxpose.xlu0.b32.cont [12/16] 0.0, 128
  %353 = vxpose.xlu0.b32.cont [13/16] 0.0, 128
  %354 = vxpose.xlu0.b32.cont [14/16] 0.0, 128
  %355 = vxpose.xlu0.b32.cont [15/16] 0.0, 128
  %356 = vxpose.xlu0.b32.end [16/16] 0.0, 128
  %v357 = vpop.trf.xlu0
  %v358 = vpop.trf.xlu0
  %v359 = vpop.trf.xlu0
  %v360 = vpop.trf.xlu0
  %v361 = vpop.trf.xlu0
  %v362 = vpop.trf.xlu0
  %v363 = vpop.trf.xlu0
  %v364 = vpop.trf.xlu0
  %v365 = vpop.trf.xlu0
  %v366 = vpop.trf.xlu0
  %v367 = vpop.trf.xlu0
  %v368 = vpop.trf.xlu0
  %v369 = vpop.trf.xlu0
  %v370 = vpop.trf.xlu0
  %v371 = vpop.trf.xlu0
  %v372 = vpop.trf.xlu0
  %v373 = vld [vmem:[%s2] sm:$0xff]
  %v374 = vld [vmem:[%s2 + $0x8] sm:$0xff]
  %v375 = vld [vmem:[%s2 + $0x10] sm:$0xff]
  %vm376 = vcmask 162816
  %v378 = vsel %vm376, %v335, 0
  %v381 = vsel %vm376, %v336, 0
  %v384 = vsel %vm376, %v337, 0
  %v387 = vsel %vm376, %v338, 0
  %v390 = vsel %vm376, %v339, 0
  %v393 = vsel %vm376, %v340, 0
  %vm395 = vcmask 1043456
  %v397 = vsel %vm395, %v273, 0
  %399 = vmatprep.subr.mxu0 0.0
  %400 = vmatpush1.msra.mxu0 %v271
  %401 = vmatprep.subr.mxu0 0.0
  %402 = vmatpush1.msra.mxu0 %v272
  %403 = vmatprep.subr.mxu0 0.0
  %404 = vmatpush1.msra.mxu0 %v397
  %405 = vmatprep.subr.mxu0 0.0
  %406 = vmatpush1.msra.mxu0 0.0
  %407 = vmatprep.subr.mxu0 0.0
  %408 = vmatpush1.msra.mxu0 0.0
  %409 = vmatprep.subr.mxu0 0.0
  %410 = vmatpush1.msra.mxu0 0.0
  %411 = vmatprep.subr.mxu0 0.0
  %412 = vmatpush1.msra.mxu0 0.0
  %413 = vmatprep.subr.mxu0 0.0
  %414 = vmatpush1.msra.mxu0 0.0
  %415 = vmatprep.subr.mxu0 0.0
  %416 = vmatpush1.msra.mxu0 0.0
  %417 = vmatprep.subr.mxu0 0.0
  %418 = vmatpush1.msra.mxu0 0.0
  %419 = vmatprep.subr.mxu0 0.0
  %420 = vmatpush1.msra.mxu0 0.0
  %421 = vmatprep.subr.mxu0 0.0
  %422 = vmatpush1.msra.mxu0 0.0
  %423 = vmatprep.subr.mxu0 0.0
  %424 = vmatpush1.msra.mxu0 0.0
  %425 = vmatprep.subr.mxu0 0.0
  %426 = vmatpush1.msra.mxu0 0.0
  %427 = vmatprep.subr.mxu0 0.0
  %428 = vmatpush1.msra.mxu0 0.0
  %429 = vmatprep.subr.mxu0 0.0
  %430 = vmatpush1.msra.mxu0 0.0
  %431 = vmatprep.subr.mxu0 0.0
  %432 = vmatpush1.msra.mxu0 0.0
  %433 = vmatprep.subr.mxu0 0.0
  %434 = vmatpush1.msra.mxu0 0.0
  %435 = vmatprep.subr.mxu0 0.0
  %436 = vmatpush1.msra.mxu0 0.0
  %437 = vmatprep.subr.mxu0 0.0
  %438 = vmatpush1.msra.mxu0 0.0
  %439 = vmatprep.subr.mxu0 0.0
  %440 = vmatpush1.msra.mxu0 0.0
  %441 = vmatprep.subr.mxu0 0.0
  %442 = vmatpush1.msra.mxu0 0.0
  %443 = vmatprep.subr.mxu0 0.0
  %444 = vmatpush1.msra.mxu0 0.0
  %445 = vmatprep.subr.mxu0 0.0
  %446 = vmatpush1.msra.mxu0 0.0
  %447 = vmatprep.subr.mxu0 0.0
  %448 = vmatpush1.msra.mxu0 0.0
  %449 = vmatprep.subr.mxu0 0.0
  %450 = vmatpush1.msra.mxu0 0.0
  %451 = vmatprep.subr.mxu0 0.0
  %452 = vmatpush1.msra.mxu0 0.0
  %453 = vmatprep.subr.mxu0 0.0
  %454 = vmatpush1.msra.mxu0 0.0
  %455 = vmatprep.subr.mxu0 0.0
  %456 = vmatpush1.msra.mxu0 0.0
  %457 = vmatprep.subr.mxu0 0.0
  %458 = vmatpush1.msra.mxu0 0.0
  %459 = vmatprep.subr.mxu0 0.0
  %460 = vmatpush1.msra.mxu0 0.0
  %461 = vmatprep.subr.mxu0 0.0
  %462 = vmatpush1.msra.mxu0 0.0
  %463 = vmatprep.mubr.f32.mxu0 0.0
  %464 = vmatmul.mubr.f32.gmra.mrb[0].mxu0 %v378
  %v465 = vpop.f32.mrb[0].mxu0
  %v466 = vadd.f32 0.0, %v465
  %v467 = vpop.f32.mrb[0].mxu0
  %468 = vmatprep.mubr.f32.mxu0 0.0
  %469 = vmatmul.mubr.f32.gmra.mrb[0].mxu0 %v381
  %v470 = vpop.f32.mrb[0].mxu0
  %v471 = vadd.f32 0.0, %v470
  %v472 = vpop.f32.mrb[0].mxu0
  %473 = vmatprep.mubr.f32.mxu0 0.0
  %474 = vmatmul.mubr.f32.gmra.mrb[0].mxu0 %v384
  %v475 = vpop.f32.mrb[0].mxu0
  %v476 = vadd.f32 0.0, %v475
  %v477 = vpop.f32.mrb[0].mxu0
  %478 = vmatprep.mubr.f32.mxu0 0.0
  %479 = vmatmul.mubr.f32.gmra.mrb[0].mxu0 %v387
  %v480 = vpop.f32.mrb[0].mxu0
  %v481 = vadd.f32 0.0, %v480
  %v482 = vpop.f32.mrb[0].mxu0
  %483 = vmatprep.mubr.f32.mxu0 0.0
  %484 = vmatmul.mubr.f32.gmra.mrb[0].mxu0 %v390
  %v485 = vpop.f32.mrb[0].mxu0
  %v486 = vadd.f32 0.0, %v485
  %v487 = vpop.f32.mrb[0].mxu0
  %488 = vmatprep.mubr.f32.mxu0 0.0
  %489 = vmatmul.mubr.f32.gmra.mrb[0].mxu0 %v393
  %v490 = vpop.f32.mrb[0].mxu0
  %v491 = vadd.f32 0.0, %v490
  %v492 = vpop.f32.mrb[0].mxu0
  %493 = vdwg.mxu0
  %v494 = vld [vmem:[%s7] sm:$0xff]
  %v495 = vld [vmem:[%s7 + $0x8] sm:$0xff]
  %v496 = vld [vmem:[%s7 + $0x10] sm:$0xff]
  %v497 = vld [vmem:[%s7 + $0x18] sm:$0xff]
  %v498 = vld [vmem:[%s8] sm:$0xff]
  %v499 = vld [vmem:[%s8 + $0x8] sm:$0xff]
  %v500 = vld [vmem:[%s8 + $0x10] sm:$0xff]
  %v501 = vld [vmem:[%s8 + $0x18] sm:$0xff]
  %v503 = vsel %vm175, %v481, 0
  %v506 = vsel %vm175, %v486, 0
  %v509 = vsel %vm175, %v491, 0
  %511 = vmatprep.subr.mxu0 0.0
  %512 = vmatpush1.msra.mxu0 %v498
  %513 = vmatprep.subr.mxu0 0.0
  %514 = vmatpush1.msra.mxu0 %v499
  %515 = vmatprep.subr.mxu0 0.0
  %516 = vmatpush1.msra.mxu0 %v500
  %517 = vmatprep.subr.mxu0 0.0
  %518 = vmatpush1.msra.mxu0 %v501
  %519 = vmatprep.subr.mxu0 0.0
  %520 = vmatpush1.msra.mxu0 0.0
  %521 = vmatprep.subr.mxu0 0.0
  %522 = vmatpush1.msra.mxu0 0.0
  %523 = vmatprep.subr.mxu0 0.0
  %524 = vmatpush1.msra.mxu0 0.0
  %525 = vmatprep.subr.mxu0 0.0
  %526 = vmatpush1.msra.mxu0 0.0
  %527 = vmatprep.subr.mxu0 0.0
  %528 = vmatpush1.msra.mxu0 0.0
  %529 = vmatprep.subr.mxu0 0.0
  %530 = vmatpush1.msra.mxu0 0.0
  %531 = vmatprep.subr.mxu0 0.0
  %532 = vmatpush1.msra.mxu0 0.0
  %533 = vmatprep.subr.mxu0 0.0
  %534 = vmatpush1.msra.mxu0 0.0
  %535 = vmatprep.subr.mxu0 0.0
  %536 = vmatpush1.msra.mxu0 0.0
  %537 = vmatprep.subr.mxu0 0.0
  %538 = vmatpush1.msra.mxu0 0.0
  %539 = vmatprep.subr.mxu0 0.0
  %540 = vmatpush1.msra.mxu0 0.0
  %541 = vmatprep.subr.mxu0 0.0
  %542 = vmatpush1.msra.mxu0 0.0
  %543 = vmatprep.subr.mxu0 0.0
  %544 = vmatpush1.msra.mxu0 0.0
  %545 = vmatprep.subr.mxu0 0.0
  %546 = vmatpush1.msra.mxu0 0.0
  %547 = vmatprep.subr.mxu0 0.0
  %548 = vmatpush1.msra.mxu0 0.0
  %549 = vmatprep.subr.mxu0 0.0
  %550 = vmatpush1.msra.mxu0 0.0
  %551 = vmatprep.subr.mxu0 0.0
  %552 = vmatpush1.msra.mxu0 0.0
  %553 = vmatprep.subr.mxu0 0.0
  %554 = vmatpush1.msra.mxu0 0.0
  %555 = vmatprep.subr.mxu0 0.0
  %556 = vmatpush1.msra.mxu0 0.0
  %557 = vmatprep.subr.mxu0 0.0
  %558 = vmatpush1.msra.mxu0 0.0
  %559 = vmatprep.subr.mxu0 0.0
  %560 = vmatpush1.msra.mxu0 0.0
  %561 = vmatprep.subr.mxu0 0.0
  %562 = vmatpush1.msra.mxu0 0.0
  %563 = vmatprep.subr.mxu0 0.0
  %564 = vmatpush1.msra.mxu0 0.0
  %565 = vmatprep.subr.mxu0 0.0
  %566 = vmatpush1.msra.mxu0 0.0
  %567 = vmatprep.subr.mxu0 0.0
  %568 = vmatpush1.msra.mxu0 0.0
  %569 = vmatprep.subr.mxu0 0.0
  %570 = vmatpush1.msra.mxu0 0.0
  %571 = vmatprep.subr.mxu0 0.0
  %572 = vmatpush1.msra.mxu0 0.0
  %573 = vmatprep.subr.mxu0 0.0
  %574 = vmatpush1.msra.mxu0 0.0
  %575 = vmatprep.mubr.f32.mxu0 0.0
  %576 = vmatmul.mubr.f32.gmra.mrb[0].mxu0 %v503
  %v577 = vpop.f32.mrb[0].mxu0
  %v578 = vadd.f32 0.0, %v577
  %v579 = vpop.f32.mrb[0].mxu0
  %580 = vmatprep.mubr.f32.mxu0 0.0
  %581 = vmatmul.mubr.f32.gmra.mrb[0].mxu0 %v506
  %v582 = vpop.f32.mrb[0].mxu0
  %v583 = vadd.f32 0.0, %v582
  %v584 = vpop.f32.mrb[0].mxu0
  %585 = vmatprep.mubr.f32.mxu0 0.0
  %586 = vmatmul.mubr.f32.gmra.mrb[0].mxu0 %v509
  %v587 = vpop.f32.mrb[0].mxu0
  %v588 = vadd.f32 0.0, %v587
  %v589 = vpop.f32.mrb[0].mxu0
  %590 = vdwg.mxu0
  %v591 = vld [vmem:[%s9] sm:$0xf]
  %vm592 = vcmask 31744
  %v594 = vsel %vm592, %v373, 0
  %v597 = vsel %vm592, %v374, 0
  %v600 = vsel %vm592, %v375, 0
  %v603 = vsel %vm395, %v591, 0
  %605 = vmatprep.subr.mxu0 0.0
  %606 = vmatpush1.msra.mxu0 %v603
  %607 = vmatprep.subr.mxu0 0.0
  %608 = vmatpush1.msra.mxu0 0.0
  %609 = vmatprep.subr.mxu0 0.0
  %610 = vmatpush1.msra.mxu0 0.0
  %611 = vmatprep.subr.mxu0 0.0
  %612 = vmatpush1.msra.mxu0 0.0
  %613 = vmatprep.subr.mxu0 0.0
  %614 = vmatpush1.msra.mxu0 0.0
  %615 = vmatprep.subr.mxu0 0.0
  %616 = vmatpush1.msra.mxu0 0.0
  %617 = vmatprep.subr.mxu0 0.0
  %618 = vmatpush1.msra.mxu0 0.0
  %619 = vmatprep.subr.mxu0 0.0
  %620 = vmatpush1.msra.mxu0 0.0
  %621 = vmatprep.subr.mxu0 0.0
  %622 = vmatpush1.msra.mxu0 0.0
  %623 = vmatprep.subr.mxu0 0.0
  %624 = vmatpush1.msra.mxu0 0.0
  %625 = vmatprep.subr.mxu0 0.0
  %626 = vmatpush1.msra.mxu0 0.0
  %627 = vmatprep.subr.mxu0 0.0
  %628 = vmatpush1.msra.mxu0 0.0
  %629 = vmatprep.subr.mxu0 0.0
  %630 = vmatpush1.msra.mxu0 0.0
  %631 = vmatprep.subr.mxu0 0.0
  %632 = vmatpush1.msra.mxu0 0.0
  %633 = vmatprep.subr.mxu0 0.0
  %634 = vmatpush1.msra.mxu0 0.0
  %635 = vmatprep.subr.mxu0 0.0
  %636 = vmatpush1.msra.mxu0 0.0
  %637 = vmatprep.subr.mxu0 0.0
  %638 = vmatpush1.msra.mxu0 0.0
  %639 = vmatprep.subr.mxu0 0.0
  %640 = vmatpush1.msra.mxu0 0.0
  %641 = vmatprep.subr.mxu0 0.0
  %642 = vmatpush1.msra.mxu0 0.0
  %643 = vmatprep.subr.mxu0 0.0
  %644 = vmatpush1.msra.mxu0 0.0
  %645 = vmatprep.subr.mxu0 0.0
  %646 = vmatpush1.msra.mxu0 0.0
  %647 = vmatprep.subr.mxu0 0.0
  %648 = vmatpush1.msra.mxu0 0.0
  %649 = vmatprep.subr.mxu0 0.0
  %650 = vmatpush1.msra.mxu0 0.0
  %651 = vmatprep.subr.mxu0 0.0
  %652 = vmatpush1.msra.mxu0 0.0
  %653 = vmatprep.subr.mxu0 0.0
  %654 = vmatpush1.msra.mxu0 0.0
  %655 = vmatprep.subr.mxu0 0.0
  %656 = vmatpush1.msra.mxu0 0.0
  %657 = vmatprep.subr.mxu0 0.0
  %658 = vmatpush1.msra.mxu0 0.0
  %659 = vmatprep.subr.mxu0 0.0
  %660 = vmatpush1.msra.mxu0 0.0
  %661 = vmatprep.subr.mxu0 0.0
  %662 = vmatpush1.msra.mxu0 0.0
  %663 = vmatprep.subr.mxu0 0.0
  %664 = vmatpush1.msra.mxu0 0.0
  %665 = vmatprep.subr.mxu0 0.0
  %666 = vmatpush1.msra.mxu0 0.0
  %667 = vmatprep.subr.mxu0 0.0
  %668 = vmatpush1.msra.mxu0 0.0
  %669 = vmatprep.mubr.f32.mxu0 0.0
  %670 = vmatmul.mubr.f32.gmra.mrb[0].mxu0 %v594
  %v671 = vpop.f32.mrb[0].mxu0
  %v672 = vadd.f32 0.0, %v671
  %v673 = vpop.f32.mrb[0].mxu0
  %674 = vmatprep.mubr.f32.mxu0 0.0
  %675 = vmatmul.mubr.f32.gmra.mrb[0].mxu0 %v597
  %v676 = vpop.f32.mrb[0].mxu0
  %v677 = vadd.f32 0.0, %v676
  %v678 = vpop.f32.mrb[0].mxu0
  %679 = vmatprep.mubr.f32.mxu0 0.0
  %680 = vmatmul.mubr.f32.gmra.mrb[0].mxu0 %v600
  %v681 = vpop.f32.mrb[0].mxu0
  %v682 = vadd.f32 0.0, %v681
  %v683 = vpop.f32.mrb[0].mxu0
  %684 = vdwg.mxu0
  %v686 = vsel %vm175, %v466, 0
  %v689 = vsel %vm175, %v471, 0
  %v692 = vsel %vm175, %v476, 0
  %694 = vmatprep.subr.mxu0 0.0
  %695 = vmatpush1.msra.mxu0 %v494
  %696 = vmatprep.subr.mxu0 0.0
  %697 = vmatpush1.msra.mxu0 %v495
  %698 = vmatprep.subr.mxu0 0.0
  %699 = vmatpush1.msra.mxu0 %v496
  %700 = vmatprep.subr.mxu0 0.0
  %701 = vmatpush1.msra.mxu0 %v497
  %702 = vmatprep.subr.mxu0 0.0
  %703 = vmatpush1.msra.mxu0 0.0
  %704 = vmatprep.subr.mxu0 0.0
  %705 = vmatpush1.msra.mxu0 0.0
  %706 = vmatprep.subr.mxu0 0.0
  %707 = vmatpush1.msra.mxu0 0.0
  %708 = vmatprep.subr.mxu0 0.0
  %709 = vmatpush1.msra.mxu0 0.0
  %710 = vmatprep.subr.mxu0 0.0
  %711 = vmatpush1.msra.mxu0 0.0
  %712 = vmatprep.subr.mxu0 0.0
  %713 = vmatpush1.msra.mxu0 0.0
  %714 = vmatprep.subr.mxu0 0.0
  %715 = vmatpush1.msra.mxu0 0.0
  %716 = vmatprep.subr.mxu0 0.0
  %717 = vmatpush1.msra.mxu0 0.0
  %718 = vmatprep.subr.mxu0 0.0
  %719 = vmatpush1.msra.mxu0 0.0
  %720 = vmatprep.subr.mxu0 0.0
  %721 = vmatpush1.msra.mxu0 0.0
  %722 = vmatprep.subr.mxu0 0.0
  %723 = vmatpush1.msra.mxu0 0.0
  %724 = vmatprep.subr.mxu0 0.0
  %725 = vmatpush1.msra.mxu0 0.0
  %726 = vmatprep.subr.mxu0 0.0
  %727 = vmatpush1.msra.mxu0 0.0
  %728 = vmatprep.subr.mxu0 0.0
  %729 = vmatpush1.msra.mxu0 0.0
  %730 = vmatprep.subr.mxu0 0.0
  %731 = vmatpush1.msra.mxu0 0.0
  %732 = vmatprep.subr.mxu0 0.0
  %733 = vmatpush1.msra.mxu0 0.0
  %734 = vmatprep.subr.mxu0 0.0
  %735 = vmatpush1.msra.mxu0 0.0
  %736 = vmatprep.subr.mxu0 0.0
  %737 = vmatpush1.msra.mxu0 0.0
  %738 = vmatprep.subr.mxu0 0.0
  %739 = vmatpush1.msra.mxu0 0.0
  %740 = vmatprep.subr.mxu0 0.0
  %741 = vmatpush1.msra.mxu0 0.0
  %742 = vmatprep.subr.mxu0 0.0
  %743 = vmatpush1.msra.mxu0 0.0
  %744 = vmatprep.subr.mxu0 0.0
  %745 = vmatpush1.msra.mxu0 0.0
  %746 = vmatprep.subr.mxu0 0.0
  %747 = vmatpush1.msra.mxu0 0.0
  %748 = vmatprep.subr.mxu0 0.0
  %749 = vmatpush1.msra.mxu0 0.0
  %750 = vmatprep.subr.mxu0 0.0
  %751 = vmatpush1.msra.mxu0 0.0
  %752 = vmatprep.subr.mxu0 0.0
  %753 = vmatpush1.msra.mxu0 0.0
  %754 = vmatprep.subr.mxu0 0.0
  %755 = vmatpush1.msra.mxu0 0.0
  %756 = vmatprep.subr.mxu0 0.0
  %757 = vmatpush1.msra.mxu0 0.0
  %758 = vmatprep.mubr.f32.mxu0 0.0
  %759 = vmatmul.mubr.f32.gmra.mrb[0].mxu0 %v686
  %v760 = vpop.f32.mrb[0].mxu0
  %v761 = vadd.f32 %v578, %v760
  %v762 = vpop.f32.mrb[0].mxu0
  %763 = vmatprep.mubr.f32.mxu0 0.0
  %764 = vmatmul.mubr.f32.gmra.mrb[0].mxu0 %v689
  %v765 = vpop.f32.mrb[0].mxu0
  %v766 = vadd.f32 %v583, %v765
  %v767 = vpop.f32.mrb[0].mxu0
  %768 = vmatprep.mubr.f32.mxu0 0.0
  %769 = vmatmul.mubr.f32.gmra.mrb[0].mxu0 %v692
  %v770 = vpop.f32.mrb[0].mxu0
  %v771 = vadd.f32 %v588, %v770
  %v772 = vpop.f32.mrb[0].mxu0
  %773 = vdwg.mxu0
  %v774 = vadd.f32 %v761, %v672
  %v775 = vadd.f32 %v766, %v677
  %v776 = vadd.f32 %v771, %v682
  %v777 = vld [vmem:[%s10] sm:$0x1]
  %v779 = vlaneseq
  %v780 = vshrl.u32 %v779, 7
  %v781 = vsub.s32 0, %v780
  %v782 = vrot.slane %v777, %v781
  %v784 = vadd.f32 %v774, %v782
  %v785 = vadd.f32 %v775, %v782
  %v786 = vadd.f32 %v776, %v782
  %v787 = vmax.f32 %v784, 0.0
  %v788 = vmax.f32 %v785, 0.0
  %v789 = vmax.f32 %v786, 0.0
  %vm790 = vcmask 195584
  %v792 = vsel %vm790, %v357, 0
  %v795 = vsel %vm790, %v358, 0
  %v798 = vsel %vm790, %v359, 0
  %800 = vmatprep.subr.mxu0 0.0
  %801 = vmatpush1.msra.mxu0 %v787
  %802 = vmatprep.subr.mxu0 0.0
  %803 = vmatpush1.msra.mxu0 %v788
  %804 = vmatprep.subr.mxu0 0.0
  %805 = vmatpush1.msra.mxu0 %v789
  %806 = vmatprep.subr.mxu0 0.0
  %807 = vmatpush1.msra.mxu0 0.0
  %808 = vmatprep.subr.mxu0 0.0
  %809 = vmatpush1.msra.mxu0 0.0
  %810 = vmatprep.subr.mxu0 0.0
  %811 = vmatpush1.msra.mxu0 0.0
  %812 = vmatprep.subr.mxu0 0.0
  %813 = vmatpush1.msra.mxu0 0.0
  %814 = vmatprep.subr.mxu0 0.0
  %815 = vmatpush1.msra.mxu0 0.0
  %816 = vmatprep.subr.mxu0 0.0
  %817 = vmatpush1.msra.mxu0 0.0
  %818 = vmatprep.subr.mxu0 0.0
  %819 = vmatpush1.msra.mxu0 0.0
  %820 = vmatprep.subr.mxu0 0.0
  %821 = vmatpush1.msra.mxu0 0.0
  %822 = vmatprep.subr.mxu0 0.0
  %823 = vmatpush1.msra.mxu0 0.0
  %824 = vmatprep.subr.mxu0 0.0
  %825 = vmatpush1.msra.mxu0 0.0
  %826 = vmatprep.subr.mxu0 0.0
  %827 = vmatpush1.msra.mxu0 0.0
  %828 = vmatprep.subr.mxu0 0.0
  %829 = vmatpush1.msra.mxu0 0.0
  %830 = vmatprep.subr.mxu0 0.0
  %831 = vmatpush1.msra.mxu0 0.0
  %832 = vmatprep.subr.mxu0 0.0
  %833 = vmatpush1.msra.mxu0 0.0
  %834 = vmatprep.subr.mxu0 0.0
  %835 = vmatpush1.msra.mxu0 0.0
  %836 = vmatprep.subr.mxu0 0.0
  %837 = vmatpush1.msra.mxu0 0.0
  %838 = vmatprep.subr.mxu0 0.0
  %839 = vmatpush1.msra.mxu0 0.0
  %840 = vmatprep.subr.mxu0 0.0
  %841 = vmatpush1.msra.mxu0 0.0
  %842 = vmatprep.subr.mxu0 0.0
  %843 = vmatpush1.msra.mxu0 0.0
  %844 = vmatprep.subr.mxu0 0.0
  %845 = vmatpush1.msra.mxu0 0.0
  %846 = vmatprep.subr.mxu0 0.0
  %847 = vmatpush1.msra.mxu0 0.0
  %848 = vmatprep.subr.mxu0 0.0
  %849 = vmatpush1.msra.mxu0 0.0
  %850 = vmatprep.subr.mxu0 0.0
  %851 = vmatpush1.msra.mxu0 0.0
  %852 = vmatprep.subr.mxu0 0.0
  %853 = vmatpush1.msra.mxu0 0.0
  %854 = vmatprep.subr.mxu0 0.0
  %855 = vmatpush1.msra.mxu0 0.0
  %856 = vmatprep.subr.mxu0 0.0
  %857 = vmatpush1.msra.mxu0 0.0
  %858 = vmatprep.subr.mxu0 0.0
  %859 = vmatpush1.msra.mxu0 0.0
  %860 = vmatprep.subr.mxu0 0.0
  %861 = vmatpush1.msra.mxu0 0.0
  %862 = vmatprep.subr.mxu0 0.0
  %863 = vmatpush1.msra.mxu0 0.0
  %864 = vmatprep.mubr.f32.mxu0 0.0
  %865 = vmatmul.mubr.f32.gmra.mrb[0].mxu0 %v792
  %v866 = vpop.f32.mrb[0].mxu0
  %v867 = vadd.f32 0.0, %v866
  %v868 = vpop.f32.mrb[0].mxu0
  %869 = vmatprep.mubr.f32.mxu0 0.0
  %870 = vmatmul.mubr.f32.gmra.mrb[0].mxu0 %v795
  %v871 = vpop.f32.mrb[0].mxu0
  %v872 = vadd.f32 0.0, %v871
  %v873 = vpop.f32.mrb[0].mxu0
  %874 = vmatprep.mubr.f32.mxu0 0.0
  %875 = vmatmul.mubr.f32.gmra.mrb[0].mxu0 %v798
  %v876 = vpop.f32.mrb[0].mxu0
  %v877 = vadd.f32 0.0, %v876
  %v878 = vpop.f32.mrb[0].mxu0
  %879 = vdwg.mxu0
  %s880 = scalar_lea.vmem %s11, 32
  %v881 = vld [vmem:[%s880] sm:$0xff]
  %v882 = vld [vmem:[%s880 + $0x8] sm:$0xff]
  %v883 = vld [vmem:[%s880 + $0x10] sm:$0xff]
  %v884 = vld [vmem:[%s880 + $0x18] sm:$0xff]
  %v886 = vsel %vm175, %v867, 0
  %v889 = vsel %vm175, %v872, 0
  %v892 = vsel %vm175, %v877, 0
  %894 = vmatprep.subr.mxu0 0.0
  %895 = vmatpush1.msra.mxu0 %v881
  %896 = vmatprep.subr.mxu0 0.0
  %897 = vmatpush1.msra.mxu0 %v882
  %898 = vmatprep.subr.mxu0 0.0
  %899 = vmatpush1.msra.mxu0 %v883
  %900 = vmatprep.subr.mxu0 0.0
  %901 = vmatpush1.msra.mxu0 %v884
  %902 = vmatprep.subr.mxu0 0.0
  %903 = vmatpush1.msra.mxu0 0.0
  %904 = vmatprep.subr.mxu0 0.0
  %905 = vmatpush1.msra.mxu0 0.0
  %906 = vmatprep.subr.mxu0 0.0
  %907 = vmatpush1.msra.mxu0 0.0
  %908 = vmatprep.subr.mxu0 0.0
  %909 = vmatpush1.msra.mxu0 0.0
  %910 = vmatprep.subr.mxu0 0.0
  %911 = vmatpush1.msra.mxu0 0.0
  %912 = vmatprep.subr.mxu0 0.0
  %913 = vmatpush1.msra.mxu0 0.0
  %914 = vmatprep.subr.mxu0 0.0
  %915 = vmatpush1.msra.mxu0 0.0
  %916 = vmatprep.subr.mxu0 0.0
  %917 = vmatpush1.msra.mxu0 0.0
  %918 = vmatprep.subr.mxu0 0.0
  %919 = vmatpush1.msra.mxu0 0.0
  %920 = vmatprep.subr.mxu0 0.0
  %921 = vmatpush1.msra.mxu0 0.0
  %922 = vmatprep.subr.mxu0 0.0
  %923 = vmatpush1.msra.mxu0 0.0
  %924 = vmatprep.subr.mxu0 0.0
  %925 = vmatpush1.msra.mxu0 0.0
  %926 = vmatprep.subr.mxu0 0.0
  %927 = vmatpush1.msra.mxu0 0.0
  %928 = vmatprep.subr.mxu0 0.0
  %929 = vmatpush1.msra.mxu0 0.0
  %930 = vmatprep.subr.mxu0 0.0
  %931 = vmatpush1.msra.mxu0 0.0
  %932 = vmatprep.subr.mxu0 0.0
  %933 = vmatpush1.msra.mxu0 0.0
  %934 = vmatprep.subr.mxu0 0.0
  %935 = vmatpush1.msra.mxu0 0.0
  %936 = vmatprep.subr.mxu0 0.0
  %937 = vmatpush1.msra.mxu0 0.0
  %938 = vmatprep.subr.mxu0 0.0
  %939 = vmatpush1.msra.mxu0 0.0
  %940 = vmatprep.subr.mxu0 0.0
  %941 = vmatpush1.msra.mxu0 0.0
  %942 = vmatprep.subr.mxu0 0.0
  %943 = vmatpush1.msra.mxu0 0.0
  %944 = vmatprep.subr.mxu0 0.0
  %945 = vmatpush1.msra.mxu0 0.0
  %946 = vmatprep.subr.mxu0 0.0
  %947 = vmatpush1.msra.mxu0 0.0
  %948 = vmatprep.subr.mxu0 0.0
  %949 = vmatpush1.msra.mxu0 0.0
  %950 = vmatprep.subr.mxu0 0.0
  %951 = vmatpush1.msra.mxu0 0.0
  %952 = vmatprep.subr.mxu0 0.0
  %953 = vmatpush1.msra.mxu0 0.0
  %954 = vmatprep.subr.mxu0 0.0
  %955 = vmatpush1.msra.mxu0 0.0
  %956 = vmatprep.subr.mxu0 0.0
  %957 = vmatpush1.msra.mxu0 0.0
  %958 = vmatprep.mubr.f32.mxu0 0.0
  %959 = vmatmul.mubr.f32.gmra.mrb[0].mxu0 %v886
  %v960 = vpop.f32.mrb[0].mxu0
  %v961 = vadd.f32 0.0, %v960
  %v962 = vpop.f32.mrb[0].mxu0
  %963 = vmatprep.mubr.f32.mxu0 0.0
  %964 = vmatmul.mubr.f32.gmra.mrb[0].mxu0 %v889
  %v965 = vpop.f32.mrb[0].mxu0
  %v966 = vadd.f32 0.0, %v965
  %v967 = vpop.f32.mrb[0].mxu0
  %968 = vmatprep.mubr.f32.mxu0 0.0
  %969 = vmatmul.mubr.f32.gmra.mrb[0].mxu0 %v892
  %v970 = vpop.f32.mrb[0].mxu0
  %v971 = vadd.f32 0.0, %v970
  %v972 = vpop.f32.mrb[0].mxu0
  %973 = vdwg.mxu0
  %v975 = vsel %vm175, %v271, 0
  %v978 = vsel %vm175, %v272, 0
  %v980 = vsel %vm175, %v273, 0
  %982 = vmatprep.subr.mxu0 0.0
  %983 = vmatpush1.msra.mxu0 %v274
  %984 = vmatprep.subr.mxu0 0.0
  %985 = vmatpush1.msra.mxu0 %v275
  %986 = vmatprep.subr.mxu0 0.0
  %987 = vmatpush1.msra.mxu0 %v276
  %988 = vmatprep.subr.mxu0 0.0
  %989 = vmatpush1.msra.mxu0 %v277
  %990 = vmatprep.subr.mxu0 0.0
  %991 = vmatpush1.msra.mxu0 0.0
  %992 = vmatprep.subr.mxu0 0.0
  %993 = vmatpush1.msra.mxu0 0.0
  %994 = vmatprep.subr.mxu0 0.0
  %995 = vmatpush1.msra.mxu0 0.0
  %996 = vmatprep.subr.mxu0 0.0
  %997 = vmatpush1.msra.mxu0 0.0
  %998 = vmatprep.subr.mxu0 0.0
  %999 = vmatpush1.msra.mxu0 0.0
  %1000 = vmatprep.subr.mxu0 0.0
  %1001 = vmatpush1.msra.mxu0 0.0
  %1002 = vmatprep.subr.mxu0 0.0
  %1003 = vmatpush1.msra.mxu0 0.0
  %1004 = vmatprep.subr.mxu0 0.0
  %1005 = vmatpush1.msra.mxu0 0.0
  %1006 = vmatprep.subr.mxu0 0.0
  %1007 = vmatpush1.msra.mxu0 0.0
  %1008 = vmatprep.subr.mxu0 0.0
  %1009 = vmatpush1.msra.mxu0 0.0
  %1010 = vmatprep.subr.mxu0 0.0
  %1011 = vmatpush1.msra.mxu0 0.0
  %1012 = vmatprep.subr.mxu0 0.0
  %1013 = vmatpush1.msra.mxu0 0.0
  %1014 = vmatprep.subr.mxu0 0.0
  %1015 = vmatpush1.msra.mxu0 0.0
  %1016 = vmatprep.subr.mxu0 0.0
  %1017 = vmatpush1.msra.mxu0 0.0
  %1018 = vmatprep.subr.mxu0 0.0
  %1019 = vmatpush1.msra.mxu0 0.0
  %1020 = vmatprep.subr.mxu0 0.0
  %1021 = vmatpush1.msra.mxu0 0.0
  %1022 = vmatprep.subr.mxu0 0.0
  %1023 = vmatpush1.msra.mxu0 0.0
  %1024 = vmatprep.subr.mxu0 0.0
  %1025 = vmatpush1.msra.mxu0 0.0
  %1026 = vmatprep.subr.mxu0 0.0
  %1027 = vmatpush1.msra.mxu0 0.0
  %1028 = vmatprep.subr.mxu0 0.0
  %1029 = vmatpush1.msra.mxu0 0.0
  %1030 = vmatprep.subr.mxu0 0.0
  %1031 = vmatpush1.msra.mxu0 0.0
  %1032 = vmatprep.subr.mxu0 0.0
  %1033 = vmatpush1.msra.mxu0 0.0
  %1034 = vmatprep.subr.mxu0 0.0
  %1035 = vmatpush1.msra.mxu0 0.0
  %1036 = vmatprep.subr.mxu0 0.0
  %1037 = vmatpush1.msra.mxu0 0.0
  %1038 = vmatprep.subr.mxu0 0.0
  %1039 = vmatpush1.msra.mxu0 0.0
  %1040 = vmatprep.subr.mxu0 0.0
  %1041 = vmatpush1.msra.mxu0 0.0
  %1042 = vmatprep.subr.mxu0 0.0
  %1043 = vmatpush1.msra.mxu0 0.0
  %1044 = vmatprep.subr.mxu0 0.0
  %1045 = vmatpush1.msra.mxu0 0.0
  %1046 = vmatprep.mubr.f32.mxu0 0.0
  %1047 = vmatmul.mubr.f32.gmra.mrb[0].mxu0 %v975
  %v1048 = vpop.f32.mrb[0].mxu0
  %v1049 = vadd.f32 %v961, %v1048
  %v1050 = vpop.f32.mrb[0].mxu0
  %1051 = vmatprep.mubr.f32.mxu0 0.0
  %1052 = vmatmul.mubr.f32.gmra.mrb[0].mxu0 %v978
  %v1053 = vpop.f32.mrb[0].mxu0
  %v1054 = vadd.f32 %v966, %v1053
  %v1055 = vpop.f32.mrb[0].mxu0
  %1056 = vmatprep.mubr.f32.mxu0 0.0
  %1057 = vmatmul.mubr.f32.gmra.mrb[0].mxu0 %v980
  %v1058 = vpop.f32.mrb[0].mxu0
  %v1059 = vadd.f32 %v971, %v1058
  %v1060 = vpop.f32.mrb[0].mxu0
  %1061 = vdwg.mxu0
  %v1062 = vsel %vm395, %v877, 0
  %1064 = vmatprep.subr.mxu0 0.0
  %1065 = vmatpush1.msra.mxu0 %v867
  %1066 = vmatprep.subr.mxu0 0.0
  %1067 = vmatpush1.msra.mxu0 %v872
  %1068 = vmatprep.subr.mxu0 0.0
  %1069 = vmatpush1.msra.mxu0 %v1062
  %1070 = vmatprep.subr.mxu0 0.0
  %1071 = vmatpush1.msra.mxu0 0.0
  %1072 = vmatprep.subr.mxu0 0.0
  %1073 = vmatpush1.msra.mxu0 0.0
  %1074 = vmatprep.subr.mxu0 0.0
  %1075 = vmatpush1.msra.mxu0 0.0
  %1076 = vmatprep.subr.mxu0 0.0
  %1077 = vmatpush1.msra.mxu0 0.0
  %1078 = vmatprep.subr.mxu0 0.0
  %1079 = vmatpush1.msra.mxu0 0.0
  %1080 = vmatprep.subr.mxu0 0.0
  %1081 = vmatpush1.msra.mxu0 0.0
  %1082 = vmatprep.subr.mxu0 0.0
  %1083 = vmatpush1.msra.mxu0 0.0
  %1084 = vmatprep.subr.mxu0 0.0
  %1085 = vmatpush1.msra.mxu0 0.0
  %1086 = vmatprep.subr.mxu0 0.0
  %1087 = vmatpush1.msra.mxu0 0.0
  %1088 = vmatprep.subr.mxu0 0.0
  %1089 = vmatpush1.msra.mxu0 0.0
  %1090 = vmatprep.subr.mxu0 0.0
  %1091 = vmatpush1.msra.mxu0 0.0
  %1092 = vmatprep.subr.mxu0 0.0
  %1093 = vmatpush1.msra.mxu0 0.0
  %1094 = vmatprep.subr.mxu0 0.0
  %1095 = vmatpush1.msra.mxu0 0.0
  %1096 = vmatprep.subr.mxu0 0.0
  %1097 = vmatpush1.msra.mxu0 0.0
  %1098 = vmatprep.subr.mxu0 0.0
  %1099 = vmatpush1.msra.mxu0 0.0
  %1100 = vmatprep.subr.mxu0 0.0
  %1101 = vmatpush1.msra.mxu0 0.0
  %1102 = vmatprep.subr.mxu0 0.0
  %1103 = vmatpush1.msra.mxu0 0.0
  %1104 = vmatprep.subr.mxu0 0.0
  %1105 = vmatpush1.msra.mxu0 0.0
  %1106 = vmatprep.subr.mxu0 0.0
  %1107 = vmatpush1.msra.mxu0 0.0
  %1108 = vmatprep.subr.mxu0 0.0
  %1109 = vmatpush1.msra.mxu0 0.0
  %1110 = vmatprep.subr.mxu0 0.0
  %1111 = vmatpush1.msra.mxu0 0.0
  %1112 = vmatprep.subr.mxu0 0.0
  %1113 = vmatpush1.msra.mxu0 0.0
  %1114 = vmatprep.subr.mxu0 0.0
  %1115 = vmatpush1.msra.mxu0 0.0
  %1116 = vmatprep.subr.mxu0 0.0
  %1117 = vmatpush1.msra.mxu0 0.0
  %1118 = vmatprep.subr.mxu0 0.0
  %1119 = vmatpush1.msra.mxu0 0.0
  %1120 = vmatprep.subr.mxu0 0.0
  %1121 = vmatpush1.msra.mxu0 0.0
  %1122 = vmatprep.subr.mxu0 0.0
  %1123 = vmatpush1.msra.mxu0 0.0
  %1124 = vmatprep.subr.mxu0 0.0
  %1125 = vmatpush1.msra.mxu0 0.0
  %1126 = vmatprep.subr.mxu0 0.0
  %1127 = vmatpush1.msra.mxu0 0.0
  %1128 = vmatprep.mubr.f32.mxu0 0.0
  %1129 = vmatmul.mubr.f32.gmra.mrb[0].mxu0 %v378
  %v1130 = vpop.f32.mrb[0].mxu0
  %v1131 = vadd.f32 0.0, %v1130
  %v1132 = vpop.f32.mrb[0].mxu0
  %1133 = vmatprep.mubr.f32.mxu0 0.0
  %1134 = vmatmul.mubr.f32.gmra.mrb[0].mxu0 %v381
  %v1135 = vpop.f32.mrb[0].mxu0
  %v1136 = vadd.f32 0.0, %v1135
  %v1137 = vpop.f32.mrb[0].mxu0
  %1138 = vmatprep.mubr.f32.mxu0 0.0
  %1139 = vmatmul.mubr.f32.gmra.mrb[0].mxu0 %v384
  %v1140 = vpop.f32.mrb[0].mxu0
  %v1141 = vadd.f32 0.0, %v1140
  %v1142 = vpop.f32.mrb[0].mxu0
  %1143 = vmatprep.mubr.f32.mxu0 0.0
  %1144 = vmatmul.mubr.f32.gmra.mrb[0].mxu0 %v387
  %v1145 = vpop.f32.mrb[0].mxu0
  %v1146 = vadd.f32 0.0, %v1145
  %v1147 = vpop.f32.mrb[0].mxu0
  %1148 = vmatprep.mubr.f32.mxu0 0.0
  %1149 = vmatmul.mubr.f32.gmra.mrb[0].mxu0 %v390
  %v1150 = vpop.f32.mrb[0].mxu0
  %v1151 = vadd.f32 0.0, %v1150
  %v1152 = vpop.f32.mrb[0].mxu0
  %1153 = vmatprep.mubr.f32.mxu0 0.0
  %1154 = vmatmul.mubr.f32.gmra.mrb[0].mxu0 %v393
  %v1155 = vpop.f32.mrb[0].mxu0
  %v1156 = vadd.f32 0.0, %v1155
  %v1157 = vpop.f32.mrb[0].mxu0
  %1158 = vdwg.mxu0
  %s1159 = scalar_lea.vmem %s7, 32
  %v1160 = vld [vmem:[%s1159] sm:$0xff]
  %v1161 = vld [vmem:[%s1159 + $0x8] sm:$0xff]
  %v1162 = vld [vmem:[%s1159 + $0x10] sm:$0xff]
  %v1163 = vld [vmem:[%s1159 + $0x18] sm:$0xff]
  %s1164 = scalar_lea.vmem %s8, 32
  %v1165 = vld [vmem:[%s1164] sm:$0xff]
  %v1166 = vld [vmem:[%s1164 + $0x8] sm:$0xff]
  %v1167 = vld [vmem:[%s1164 + $0x10] sm:$0xff]
  %v1168 = vld [vmem:[%s1164 + $0x18] sm:$0xff]
  %v1170 = vsel %vm175, %v1146, 0
  %v1173 = vsel %vm175, %v1151, 0
  %v1176 = vsel %vm175, %v1156, 0
  %1178 = vmatprep.subr.mxu0 0.0
  %1179 = vmatpush1.msra.mxu0 %v1165
  %1180 = vmatprep.subr.mxu0 0.0
  %1181 = vmatpush1.msra.mxu0 %v1166
  %1182 = vmatprep.subr.mxu0 0.0
  %1183 = vmatpush1.msra.mxu0 %v1167
  %1184 = vmatprep.subr.mxu0 0.0
  %1185 = vmatpush1.msra.mxu0 %v1168
  %1186 = vmatprep.subr.mxu0 0.0
  %1187 = vmatpush1.msra.mxu0 0.0
  %1188 = vmatprep.subr.mxu0 0.0
  %1189 = vmatpush1.msra.mxu0 0.0
  %1190 = vmatprep.subr.mxu0 0.0
  %1191 = vmatpush1.msra.mxu0 0.0
  %1192 = vmatprep.subr.mxu0 0.0
  %1193 = vmatpush1.msra.mxu0 0.0
  %1194 = vmatprep.subr.mxu0 0.0
  %1195 = vmatpush1.msra.mxu0 0.0
  %1196 = vmatprep.subr.mxu0 0.0
  %1197 = vmatpush1.msra.mxu0 0.0
  %1198 = vmatprep.subr.mxu0 0.0
  %1199 = vmatpush1.msra.mxu0 0.0
  %1200 = vmatprep.subr.mxu0 0.0
  %1201 = vmatpush1.msra.mxu0 0.0
  %1202 = vmatprep.subr.mxu0 0.0
  %1203 = vmatpush1.msra.mxu0 0.0
  %1204 = vmatprep.subr.mxu0 0.0
  %1205 = vmatpush1.msra.mxu0 0.0
  %1206 = vmatprep.subr.mxu0 0.0
  %1207 = vmatpush1.msra.mxu0 0.0
  %1208 = vmatprep.subr.mxu0 0.0
  %1209 = vmatpush1.msra.mxu0 0.0
  %1210 = vmatprep.subr.mxu0 0.0
  %1211 = vmatpush1.msra.mxu0 0.0
  %1212 = vmatprep.subr.mxu0 0.0
  %1213 = vmatpush1.msra.mxu0 0.0
  %1214 = vmatprep.subr.mxu0 0.0
  %1215 = vmatpush1.msra.mxu0 0.0
  %1216 = vmatprep.subr.mxu0 0.0
  %1217 = vmatpush1.msra.mxu0 0.0
  %1218 = vmatprep.subr.mxu0 0.0
  %1219 = vmatpush1.msra.mxu0 0.0
  %1220 = vmatprep.subr.mxu0 0.0
  %1221 = vmatpush1.msra.mxu0 0.0
  %1222 = vmatprep.subr.mxu0 0.0
  %1223 = vmatpush1.msra.mxu0 0.0
  %1224 = vmatprep.subr.mxu0 0.0
  %1225 = vmatpush1.msra.mxu0 0.0
  %1226 = vmatprep.subr.mxu0 0.0
  %1227 = vmatpush1.msra.mxu0 0.0
  %1228 = vmatprep.subr.mxu0 0.0
  %1229 = vmatpush1.msra.mxu0 0.0
  %1230 = vmatprep.subr.mxu0 0.0
  %1231 = vmatpush1.msra.mxu0 0.0
  %1232 = vmatprep.subr.mxu0 0.0
  %1233 = vmatpush1.msra.mxu0 0.0
  %1234 = vmatprep.subr.mxu0 0.0
  %1235 = vmatpush1.msra.mxu0 0.0
  %1236 = vmatprep.subr.mxu0 0.0
  %1237 = vmatpush1.msra.mxu0 0.0
  %1238 = vmatprep.subr.mxu0 0.0
  %1239 = vmatpush1.msra.mxu0 0.0
  %1240 = vmatprep.subr.mxu0 0.0
  %1241 = vmatpush1.msra.mxu0 0.0
  %1242 = vmatprep.mubr.f32.mxu0 0.0
  %1243 = vmatmul.mubr.f32.gmra.mrb[0].mxu0 %v1170
  %v1244 = vpop.f32.mrb[0].mxu0
  %v1245 = vadd.f32 0.0, %v1244
  %v1246 = vpop.f32.mrb[0].mxu0
  %1247 = vmatprep.mubr.f32.mxu0 0.0
  %1248 = vmatmul.mubr.f32.gmra.mrb[0].mxu0 %v1173
  %v1249 = vpop.f32.mrb[0].mxu0
  %v1250 = vadd.f32 0.0, %v1249
  %v1251 = vpop.f32.mrb[0].mxu0
  %1252 = vmatprep.mubr.f32.mxu0 0.0
  %1253 = vmatmul.mubr.f32.gmra.mrb[0].mxu0 %v1176
  %v1254 = vpop.f32.mrb[0].mxu0
  %v1255 = vadd.f32 0.0, %v1254
  %v1256 = vpop.f32.mrb[0].mxu0
  %1257 = vdwg.mxu0
  %s1258 = scalar_lea.vmem %s9, 4
  %v1259 = vld [vmem:[%s1258] sm:$0xf]
  %v1261 = vsel %vm395, %v1259, 0
  %1263 = vmatprep.subr.mxu0 0.0
  %1264 = vmatpush1.msra.mxu0 %v1261
  %1265 = vmatprep.subr.mxu0 0.0
  %1266 = vmatpush1.msra.mxu0 0.0
  %1267 = vmatprep.subr.mxu0 0.0
  %1268 = vmatpush1.msra.mxu0 0.0
  %1269 = vmatprep.subr.mxu0 0.0
  %1270 = vmatpush1.msra.mxu0 0.0
  %1271 = vmatprep.subr.mxu0 0.0
  %1272 = vmatpush1.msra.mxu0 0.0
  %1273 = vmatprep.subr.mxu0 0.0
  %1274 = vmatpush1.msra.mxu0 0.0
  %1275 = vmatprep.subr.mxu0 0.0
  %1276 = vmatpush1.msra.mxu0 0.0
  %1277 = vmatprep.subr.mxu0 0.0
  %1278 = vmatpush1.msra.mxu0 0.0
  %1279 = vmatprep.subr.mxu0 0.0
  %1280 = vmatpush1.msra.mxu0 0.0
  %1281 = vmatprep.subr.mxu0 0.0
  %1282 = vmatpush1.msra.mxu0 0.0
  %1283 = vmatprep.subr.mxu0 0.0
  %1284 = vmatpush1.msra.mxu0 0.0
  %1285 = vmatprep.subr.mxu0 0.0
  %1286 = vmatpush1.msra.mxu0 0.0
  %1287 = vmatprep.subr.mxu0 0.0
  %1288 = vmatpush1.msra.mxu0 0.0
  %1289 = vmatprep.subr.mxu0 0.0
  %1290 = vmatpush1.msra.mxu0 0.0
  %1291 = vmatprep.subr.mxu0 0.0
  %1292 = vmatpush1.msra.mxu0 0.0
  %1293 = vmatprep.subr.mxu0 0.0
  %1294 = vmatpush1.msra.mxu0 0.0
  %1295 = vmatprep.subr.mxu0 0.0
  %1296 = vmatpush1.msra.mxu0 0.0
  %1297 = vmatprep.subr.mxu0 0.0
  %1298 = vmatpush1.msra.mxu0 0.0
  %1299 = vmatprep.subr.mxu0 0.0
  %1300 = vmatpush1.msra.mxu0 0.0
  %1301 = vmatprep.subr.mxu0 0.0
  %1302 = vmatpush1.msra.mxu0 0.0
  %1303 = vmatprep.subr.mxu0 0.0
  %1304 = vmatpush1.msra.mxu0 0.0
  %1305 = vmatprep.subr.mxu0 0.0
  %1306 = vmatpush1.msra.mxu0 0.0
  %1307 = vmatprep.subr.mxu0 0.0
  %1308 = vmatpush1.msra.mxu0 0.0
  %1309 = vmatprep.subr.mxu0 0.0
  %1310 = vmatpush1.msra.mxu0 0.0
  %1311 = vmatprep.subr.mxu0 0.0
  %1312 = vmatpush1.msra.mxu0 0.0
  %1313 = vmatprep.subr.mxu0 0.0
  %1314 = vmatpush1.msra.mxu0 0.0
  %1315 = vmatprep.subr.mxu0 0.0
  %1316 = vmatpush1.msra.mxu0 0.0
  %1317 = vmatprep.subr.mxu0 0.0
  %1318 = vmatpush1.msra.mxu0 0.0
  %1319 = vmatprep.subr.mxu0 0.0
  %1320 = vmatpush1.msra.mxu0 0.0
  %1321 = vmatprep.subr.mxu0 0.0
  %1322 = vmatpush1.msra.mxu0 0.0
  %1323 = vmatprep.subr.mxu0 0.0
  %1324 = vmatpush1.msra.mxu0 0.0
  %1325 = vmatprep.subr.mxu0 0.0
  %1326 = vmatpush1.msra.mxu0 0.0
  %1327 = vmatprep.mubr.f32.mxu0 0.0
  %1328 = vmatmul.mubr.f32.gmra.mrb[0].mxu0 %v594
  %v1329 = vpop.f32.mrb[0].mxu0
  %v1330 = vadd.f32 0.0, %v1329
  %v1331 = vpop.f32.mrb[0].mxu0
  %1332 = vmatprep.mubr.f32.mxu0 0.0
  %1333 = vmatmul.mubr.f32.gmra.mrb[0].mxu0 %v597
  %v1334 = vpop.f32.mrb[0].mxu0
  %v1335 = vadd.f32 0.0, %v1334
  %v1336 = vpop.f32.mrb[0].mxu0
  %1337 = vmatprep.mubr.f32.mxu0 0.0
  %1338 = vmatmul.mubr.f32.gmra.mrb[0].mxu0 %v600
  %v1339 = vpop.f32.mrb[0].mxu0
  %v1340 = vadd.f32 0.0, %v1339
  %v1341 = vpop.f32.mrb[0].mxu0
  %1342 = vdwg.mxu0
  %v1344 = vsel %vm175, %v1131, 0
  %v1347 = vsel %vm175, %v1136, 0
  %v1350 = vsel %vm175, %v1141, 0
  %1352 = vmatprep.subr.mxu0 0.0
  %1353 = vmatpush1.msra.mxu0 %v1160
  %1354 = vmatprep.subr.mxu0 0.0
  %1355 = vmatpush1.msra.mxu0 %v1161
  %1356 = vmatprep.subr.mxu0 0.0
  %1357 = vmatpush1.msra.mxu0 %v1162
  %1358 = vmatprep.subr.mxu0 0.0
  %1359 = vmatpush1.msra.mxu0 %v1163
  %1360 = vmatprep.subr.mxu0 0.0
  %1361 = vmatpush1.msra.mxu0 0.0
  %1362 = vmatprep.subr.mxu0 0.0
  %1363 = vmatpush1.msra.mxu0 0.0
  %1364 = vmatprep.subr.mxu0 0.0
  %1365 = vmatpush1.msra.mxu0 0.0
  %1366 = vmatprep.subr.mxu0 0.0
  %1367 = vmatpush1.msra.mxu0 0.0
  %1368 = vmatprep.subr.mxu0 0.0
  %1369 = vmatpush1.msra.mxu0 0.0
  %1370 = vmatprep.subr.mxu0 0.0
  %1371 = vmatpush1.msra.mxu0 0.0
  %1372 = vmatprep.subr.mxu0 0.0
  %1373 = vmatpush1.msra.mxu0 0.0
  %1374 = vmatprep.subr.mxu0 0.0
  %1375 = vmatpush1.msra.mxu0 0.0
  %1376 = vmatprep.subr.mxu0 0.0
  %1377 = vmatpush1.msra.mxu0 0.0
  %1378 = vmatprep.subr.mxu0 0.0
  %1379 = vmatpush1.msra.mxu0 0.0
  %1380 = vmatprep.subr.mxu0 0.0
  %1381 = vmatpush1.msra.mxu0 0.0
  %1382 = vmatprep.subr.mxu0 0.0
  %1383 = vmatpush1.msra.mxu0 0.0
  %1384 = vmatprep.subr.mxu0 0.0
  %1385 = vmatpush1.msra.mxu0 0.0
  %1386 = vmatprep.subr.mxu0 0.0
  %1387 = vmatpush1.msra.mxu0 0.0
  %1388 = vmatprep.subr.mxu0 0.0
  %1389 = vmatpush1.msra.mxu0 0.0
  %1390 = vmatprep.subr.mxu0 0.0
  %1391 = vmatpush1.msra.mxu0 0.0
  %1392 = vmatprep.subr.mxu0 0.0
  %1393 = vmatpush1.msra.mxu0 0.0
  %1394 = vmatprep.subr.mxu0 0.0
  %1395 = vmatpush1.msra.mxu0 0.0
  %1396 = vmatprep.subr.mxu0 0.0
  %1397 = vmatpush1.msra.mxu0 0.0
  %1398 = vmatprep.subr.mxu0 0.0
  %1399 = vmatpush1.msra.mxu0 0.0
  %1400 = vmatprep.subr.mxu0 0.0
  %1401 = vmatpush1.msra.mxu0 0.0
  %1402 = vmatprep.subr.mxu0 0.0
  %1403 = vmatpush1.msra.mxu0 0.0
  %1404 = vmatprep.subr.mxu0 0.0
  %1405 = vmatpush1.msra.mxu0 0.0
  %1406 = vmatprep.subr.mxu0 0.0
  %1407 = vmatpush1.msra.mxu0 0.0
  %1408 = vmatprep.subr.mxu0 0.0
  %1409 = vmatpush1.msra.mxu0 0.0
  %1410 = vmatprep.subr.mxu0 0.0
  %1411 = vmatpush1.msra.mxu0 0.0
  %1412 = vmatprep.subr.mxu0 0.0
  %1413 = vmatpush1.msra.mxu0 0.0
  %1414 = vmatprep.subr.mxu0 0.0
  %1415 = vmatpush1.msra.mxu0 0.0
  %1416 = vmatprep.mubr.f32.mxu0 0.0
  %1417 = vmatmul.mubr.f32.gmra.mrb[0].mxu0 %v1344
  %v1418 = vpop.f32.mrb[0].mxu0
  %v1419 = vadd.f32 %v1245, %v1418
  %v1420 = vpop.f32.mrb[0].mxu0
  %1421 = vmatprep.mubr.f32.mxu0 0.0
  %1422 = vmatmul.mubr.f32.gmra.mrb[0].mxu0 %v1347
  %v1423 = vpop.f32.mrb[0].mxu0
  %v1424 = vadd.f32 %v1250, %v1423
  %v1425 = vpop.f32.mrb[0].mxu0
  %1426 = vmatprep.mubr.f32.mxu0 0.0
  %1427 = vmatmul.mubr.f32.gmra.mrb[0].mxu0 %v1350
  %v1428 = vpop.f32.mrb[0].mxu0
  %v1429 = vadd.f32 %v1255, %v1428
  %v1430 = vpop.f32.mrb[0].mxu0
  %1431 = vdwg.mxu0
  %v1432 = vadd.f32 %v1419, %v1330
  %v1433 = vadd.f32 %v1424, %v1335
  %v1434 = vadd.f32 %v1429, %v1340
  %s1435 = scalar_lea.vmem %s10, 1
  %v1436 = vld [vmem:[%s1435] sm:$0x1]
  %v1438 = vlaneseq
  %v1439 = vshrl.u32 %v1438, 7
  %v1440 = vsub.s32 0, %v1439
  %v1441 = vrot.slane %v1436, %v1440
  %v1443 = vadd.f32 %v1432, %v1441
  %v1444 = vadd.f32 %v1433, %v1441
  %v1445 = vadd.f32 %v1434, %v1441
  %v1446 = vmax.f32 %v1443, 0.0
  %v1447 = vmax.f32 %v1444, 0.0
  %v1448 = vmax.f32 %v1445, 0.0
  %1449 = vmatprep.subr.mxu0 0.0
  %1450 = vmatpush1.msra.mxu0 %v1446
  %1451 = vmatprep.subr.mxu0 0.0
  %1452 = vmatpush1.msra.mxu0 %v1447
  %1453 = vmatprep.subr.mxu0 0.0
  %1454 = vmatpush1.msra.mxu0 %v1448
  %1455 = vmatprep.subr.mxu0 0.0
  %1456 = vmatpush1.msra.mxu0 0.0
  %1457 = vmatprep.subr.mxu0 0.0
  %1458 = vmatpush1.msra.mxu0 0.0
  %1459 = vmatprep.subr.mxu0 0.0
  %1460 = vmatpush1.msra.mxu0 0.0
  %1461 = vmatprep.subr.mxu0 0.0
  %1462 = vmatpush1.msra.mxu0 0.0
  %1463 = vmatprep.subr.mxu0 0.0
  %1464 = vmatpush1.msra.mxu0 0.0
  %1465 = vmatprep.subr.mxu0 0.0
  %1466 = vmatpush1.msra.mxu0 0.0
  %1467 = vmatprep.subr.mxu0 0.0
  %1468 = vmatpush1.msra.mxu0 0.0
  %1469 = vmatprep.subr.mxu0 0.0
  %1470 = vmatpush1.msra.mxu0 0.0
  %1471 = vmatprep.subr.mxu0 0.0
  %1472 = vmatpush1.msra.mxu0 0.0
  %1473 = vmatprep.subr.mxu0 0.0
  %1474 = vmatpush1.msra.mxu0 0.0
  %1475 = vmatprep.subr.mxu0 0.0
  %1476 = vmatpush1.msra.mxu0 0.0
  %1477 = vmatprep.subr.mxu0 0.0
  %1478 = vmatpush1.msra.mxu0 0.0
  %1479 = vmatprep.subr.mxu0 0.0
  %1480 = vmatpush1.msra.mxu0 0.0
  %1481 = vmatprep.subr.mxu0 0.0
  %1482 = vmatpush1.msra.mxu0 0.0
  %1483 = vmatprep.subr.mxu0 0.0
  %1484 = vmatpush1.msra.mxu0 0.0
  %1485 = vmatprep.subr.mxu0 0.0
  %1486 = vmatpush1.msra.mxu0 0.0
  %1487 = vmatprep.subr.mxu0 0.0
  %1488 = vmatpush1.msra.mxu0 0.0
  %1489 = vmatprep.subr.mxu0 0.0
  %1490 = vmatpush1.msra.mxu0 0.0
  %1491 = vmatprep.subr.mxu0 0.0
  %1492 = vmatpush1.msra.mxu0 0.0
  %1493 = vmatprep.subr.mxu0 0.0
  %1494 = vmatpush1.msra.mxu0 0.0
  %1495 = vmatprep.subr.mxu0 0.0
  %1496 = vmatpush1.msra.mxu0 0.0
  %1497 = vmatprep.subr.mxu0 0.0
  %1498 = vmatpush1.msra.mxu0 0.0
  %1499 = vmatprep.subr.mxu0 0.0
  %1500 = vmatpush1.msra.mxu0 0.0
  %1501 = vmatprep.subr.mxu0 0.0
  %1502 = vmatpush1.msra.mxu0 0.0
  %1503 = vmatprep.subr.mxu0 0.0
  %1504 = vmatpush1.msra.mxu0 0.0
  %1505 = vmatprep.subr.mxu0 0.0
  %1506 = vmatpush1.msra.mxu0 0.0
  %1507 = vmatprep.subr.mxu0 0.0
  %1508 = vmatpush1.msra.mxu0 0.0
  %1509 = vmatprep.subr.mxu0 0.0
  %1510 = vmatpush1.msra.mxu0 0.0
  %1511 = vmatprep.subr.mxu0 0.0
  %1512 = vmatpush1.msra.mxu0 0.0
  %1513 = vmatprep.mubr.f32.mxu0 0.0
  %1514 = vmatmul.mubr.f32.gmra.mrb[0].mxu0 %v792
  %v1515 = vpop.f32.mrb[0].mxu0
  %v1516 = vadd.f32 0.0, %v1515
  %v1517 = vpop.f32.mrb[0].mxu0
  %1518 = vmatprep.mubr.f32.mxu0 0.0
  %1519 = vmatmul.mubr.f32.gmra.mrb[0].mxu0 %v795
  %v1520 = vpop.f32.mrb[0].mxu0
  %v1521 = vadd.f32 0.0, %v1520
  %v1522 = vpop.f32.mrb[0].mxu0
  %1523 = vmatprep.mubr.f32.mxu0 0.0
  %1524 = vmatmul.mubr.f32.gmra.mrb[0].mxu0 %v798
  %v1525 = vpop.f32.mrb[0].mxu0
  %v1526 = vadd.f32 0.0, %v1525
  %v1527 = vpop.f32.mrb[0].mxu0
  %1528 = vdwg.mxu0
  %s1529 = scalar_lea.vmem %s11, 64
  %v1530 = vld [vmem:[%s1529] sm:$0xff]
  %v1531 = vld [vmem:[%s1529 + $0x8] sm:$0xff]
  %v1532 = vld [vmem:[%s1529 + $0x10] sm:$0xff]
  %v1533 = vld [vmem:[%s1529 + $0x18] sm:$0xff]
  %v1535 = vsel %vm175, %v1516, 0
  %v1538 = vsel %vm175, %v1521, 0
  %v1541 = vsel %vm175, %v1526, 0
  %1543 = vmatprep.subr.mxu0 0.0
  %1544 = vmatpush1.msra.mxu0 %v1530
  %1545 = vmatprep.subr.mxu0 0.0
  %1546 = vmatpush1.msra.mxu0 %v1531
  %1547 = vmatprep.subr.mxu0 0.0
  %1548 = vmatpush1.msra.mxu0 %v1532
  %1549 = vmatprep.subr.mxu0 0.0
  %1550 = vmatpush1.msra.mxu0 %v1533
  %1551 = vmatprep.subr.mxu0 0.0
  %1552 = vmatpush1.msra.mxu0 0.0
  %1553 = vmatprep.subr.mxu0 0.0
  %1554 = vmatpush1.msra.mxu0 0.0
  %1555 = vmatprep.subr.mxu0 0.0
  %1556 = vmatpush1.msra.mxu0 0.0
  %1557 = vmatprep.subr.mxu0 0.0
  %1558 = vmatpush1.msra.mxu0 0.0
  %1559 = vmatprep.subr.mxu0 0.0
  %1560 = vmatpush1.msra.mxu0 0.0
  %1561 = vmatprep.subr.mxu0 0.0
  %1562 = vmatpush1.msra.mxu0 0.0
  %1563 = vmatprep.subr.mxu0 0.0
  %1564 = vmatpush1.msra.mxu0 0.0
  %1565 = vmatprep.subr.mxu0 0.0
  %1566 = vmatpush1.msra.mxu0 0.0
  %1567 = vmatprep.subr.mxu0 0.0
  %1568 = vmatpush1.msra.mxu0 0.0
  %1569 = vmatprep.subr.mxu0 0.0
  %1570 = vmatpush1.msra.mxu0 0.0
  %1571 = vmatprep.subr.mxu0 0.0
  %1572 = vmatpush1.msra.mxu0 0.0
  %1573 = vmatprep.subr.mxu0 0.0
  %1574 = vmatpush1.msra.mxu0 0.0
  %1575 = vmatprep.subr.mxu0 0.0
  %1576 = vmatpush1.msra.mxu0 0.0
  %1577 = vmatprep.subr.mxu0 0.0
  %1578 = vmatpush1.msra.mxu0 0.0
  %1579 = vmatprep.subr.mxu0 0.0
  %1580 = vmatpush1.msra.mxu0 0.0
  %1581 = vmatprep.subr.mxu0 0.0
  %1582 = vmatpush1.msra.mxu0 0.0
  %1583 = vmatprep.subr.mxu0 0.0
  %1584 = vmatpush1.msra.mxu0 0.0
  %1585 = vmatprep.subr.mxu0 0.0
  %1586 = vmatpush1.msra.mxu0 0.0
  %1587 = vmatprep.subr.mxu0 0.0
  %1588 = vmatpush1.msra.mxu0 0.0
  %1589 = vmatprep.subr.mxu0 0.0
  %1590 = vmatpush1.msra.mxu0 0.0
  %1591 = vmatprep.subr.mxu0 0.0
  %1592 = vmatpush1.msra.mxu0 0.0
  %1593 = vmatprep.subr.mxu0 0.0
  %1594 = vmatpush1.msra.mxu0 0.0
  %1595 = vmatprep.subr.mxu0 0.0
  %1596 = vmatpush1.msra.mxu0 0.0
  %1597 = vmatprep.subr.mxu0 0.0
  %1598 = vmatpush1.msra.mxu0 0.0
  %1599 = vmatprep.subr.mxu0 0.0
  %1600 = vmatpush1.msra.mxu0 0.0
  %1601 = vmatprep.subr.mxu0 0.0
  %1602 = vmatpush1.msra.mxu0 0.0
  %1603 = vmatprep.subr.mxu0 0.0
  %1604 = vmatpush1.msra.mxu0 0.0
  %1605 = vmatprep.subr.mxu0 0.0
  %1606 = vmatpush1.msra.mxu0 0.0
  %1607 = vmatprep.mubr.f32.mxu0 0.0
  %1608 = vmatmul.mubr.f32.gmra.mrb[0].mxu0 %v1535
  %v1609 = vpop.f32.mrb[0].mxu0
  %v1610 = vadd.f32 0.0, %v1609
  %v1611 = vpop.f32.mrb[0].mxu0
  %1612 = vmatprep.mubr.f32.mxu0 0.0
  %1613 = vmatmul.mubr.f32.gmra.mrb[0].mxu0 %v1538
  %v1614 = vpop.f32.mrb[0].mxu0
  %v1615 = vadd.f32 0.0, %v1614
  %v1616 = vpop.f32.mrb[0].mxu0
  %1617 = vmatprep.mubr.f32.mxu0 0.0
  %1618 = vmatmul.mubr.f32.gmra.mrb[0].mxu0 %v1541
  %v1619 = vpop.f32.mrb[0].mxu0
  %v1620 = vadd.f32 0.0, %v1619
  %v1621 = vpop.f32.mrb[0].mxu0
  %1622 = vdwg.mxu0
  %v1623 = vadd.f32 %v1049, %v1610
  %v1624 = vadd.f32 %v1054, %v1615
  %v1625 = vadd.f32 %v1059, %v1620
  %v1626 = vld [vmem:[%s12] sm:$0x1]
  %v1628 = vlaneseq
  %v1629 = vshrl.u32 %v1628, 7
  %v1630 = vsub.s32 0, %v1629
  %v1631 = vrot.slane %v1626, %v1630
  %v1633 = vadd.f32 %v1623, %v1631
  %v1634 = vadd.f32 %v1624, %v1631
  %v1635 = vadd.f32 %v1625, %v1631
  %vm1636 = vcmp.ge.f32.partialorder %v1633, 0.0
  %vm1637 = vcmp.ge.f32.partialorder %v1634, 0.0
  %vm1638 = vcmp.ge.f32.partialorder %v1635, 0.0
  %v1639 = vmul.f32 %v1633, 0.1
  %v1640 = vmul.f32 %v1634, 0.1
  %v1641 = vmul.f32 %v1635, 0.1
  %v1642 = vsel %vm1636, %v1633, %v1639
  %v1643 = vsel %vm1637, %v1634, %v1640
  %v1644 = vsel %vm1638, %v1635, %v1641
  %1645 = vst.msk [vmem:[%s13] sm:$0xff] %vm56, %v1642
  %1646 = vst.msk [vmem:[%s13 + $0x8] sm:$0xff] %vm56, %v1643
  %vm1647 = vcmask 125952
  %1648 = vst.msk [vmem:[%s13 + $0x10] sm:$0xf] %vm1647, %v1644
  // Predicated region
  $region54: #{gnn_encoder_forward.1} parent=0 // pred_check
    _
  $region55: #{gnn_encoder_forward.1} parent=0 // pred_check_branch
    %1650 = sbr.rel (0) target = $region57
  $region56: #{gnn_encoder_forward.1} parent=0 // pred_region
    _
  $region57: #{gnn_encoder_forward.1} parent=0 // pred_fallthru
    _
  // Predicated region
  $region58: #{gnn_encoder_forward.1} parent=0 // pred_check
    _
  $region59: #{gnn_encoder_forward.1} parent=0 // pred_check_branch
    %1652 = sbr.rel (0) target = $region61
  $region60: #{gnn_encoder_forward.1} parent=0 // pred_region
    _
  $region61: #{gnn_encoder_forward.1} parent=0 // pred_fallthru
    _

</llo_original>
